<compile_context>
chip_gen: v5e
topology: v5e:2x2
jax: 0.10.0
libtpu: 0.0.40
codegen_flags: <defaults>
</compile_context>

<pallas_src>
import jax
import jax.numpy as jnp
from jax import lax
from jax.experimental import pallas as pl
from jax.experimental.pallas import tpu as pltpu


# ----------------------------------------------------------------------------
# Kernel
# ----------------------------------------------------------------------------
def _make_gru_encoder_kernel(hp: int, chunk: int):
    """hp = hidden size padded to a multiple of 128 lanes; chunk = tokens per grid step."""

    def kernel(x_ref,      # (chunk, hp)  bf16  pre-gathered embedding rows for this chunk
               wx_ref,     # (hp, 3hp)    bf16  W_ih^T, gate-block padded (r|z|n), VMEM-resident
               wh_ref,     # (hp, 3hp)    bf16  W_hh^T, gate-block padded (r|z|n), VMEM-resident
               bx_ref,     # (1, 3hp)     f32   b_ih, gate-block padded
               bh_ref,     # (1, 3hp)     f32   b_hh, gate-block padded
               h0_ref,     # (1, hp)      f32   initial hidden state
               out_ref,    # (chunk, hp)  bf16  per-step hidden states (== GRU outputs)
               h_scr,      # (1, hp)      f32   VMEM scratch: recurrent hidden state
               gx_scr):    # (chunk, 3hp) f32   VMEM scratch: hoisted input-gate pre-activations
        c = pl.program_id(0)

        @pl.when(c == 0)
        def _():
            h_scr[...] = h0_ref[...]

        # Hoisted input projection for the whole chunk: fills `chunk` MXU rows
        # in a single matmul instead of 1 row per token inside the recurrence.
        gx_scr[...] = (
            jnp.dot(x_ref[...], wx_ref[...], preferred_element_type=jnp.float32)
            + bx_ref[...]
        )

        wh = wh_ref[...]          # hoisted loads (VMEM-resident weights / biases)
        bh = bh_ref[...]

        def step(t, h):
            gx = gx_scr[pl.ds(t, 1), :]                                 # (1, 3hp) f32
            gh = jnp.dot(h.astype(wh.dtype), wh,
                         preferred_element_type=jnp.float32) + bh       # (1, 3hp) f32
            # Gate slices are 128-lane aligned (PyTorch gate order r | z | n).
            r = jax.nn.sigmoid(gx[:, 0:hp] + gh[:, 0:hp])
            z = jax.nn.sigmoid(gx[:, hp:2 * hp] + gh[:, hp:2 * hp])
            n = jnp.tanh(gx[:, 2 * hp:3 * hp] + r * gh[:, 2 * hp:3 * hp])
            h_new = (1.0 - z) * n + z * h                                # (1, hp) f32
            out_ref[pl.ds(t, 1), :] = h_new.astype(out_ref.dtype)
            return h_new

        # Fully unrolled recurrence over the chunk (LLO scheduler visibility).
        h_final = lax.fori_loop(0, chunk, step, h_scr[...], unroll=True)
        h_scr[...] = h_final

    return kernel


# ----------------------------------------------------------------------------
# Wrappers
# ----------------------------------------------------------------------------
def encoder_rnn_sequence(tokens, hidden, params, chunk=8):
    """Run the encoder over a whole token sequence in one fused pallas_call.

    tokens : (T,) int32 token ids
    hidden : (1, 1, H) f32 initial hidden state
    returns: (outputs (T, 1, H) f32, final hidden (1, 1, H) f32)
    """
    emb_p = params["emb_p"]          # (V, Hp)   bf16
    w_x = params["w_x"]              # (Hp, 3Hp) bf16
    w_h = params["w_h"]              # (Hp, 3Hp) bf16
    b_x = params["b_x"]              # (1, 3Hp)  f32
    b_h = params["b_h"]              # (1, 3Hp)  f32
    H = params["hidden_size"]
    Hp = emb_p.shape[1]

    chunk = 8 * pl.cdiv(int(chunk), 8)          # keep the sublane dim a multiple of 8
    tokens = jnp.asarray(tokens, dtype=jnp.int32).reshape(-1)
    T = tokens.shape[0]
    n_chunks = pl.cdiv(T, chunk)
    Tp = n_chunks * chunk

    # One XLA gather for the whole sequence (replaces per-token 256 B DMAs),
    # padded to a chunk multiple (padded steps produce rows we slice off).
    x_seq = jnp.take(emb_p, tokens, axis=0)                  # (T, Hp) bf16
    if Tp != T:
        x_seq = jnp.pad(x_seq, ((0, Tp - T), (0, 0)))

    h0 = jnp.zeros((1, Hp), jnp.float32).at[:, :H].set(
        hidden.reshape(1, H).astype(jnp.float32))

    kernel = _make_gru_encoder_kernel(Hp, chunk)

    grid_spec = pltpu.PrefetchScalarGridSpec(
        num_scalar_prefetch=0,
        grid=(n_chunks,),
        in_specs=[
            # streaming embedding chunk (pipelined ahead of compute)
            pl.BlockSpec((chunk, Hp), lambda c: (c, 0)),
            # constant-index weights / biases / h0: DMA'd once, VMEM-resident
            pl.BlockSpec((Hp, 3 * Hp), lambda c: (0, 0)),
            pl.BlockSpec((Hp, 3 * Hp), lambda c: (0, 0)),
            pl.BlockSpec((1, 3 * Hp), lambda c: (0, 0)),
            pl.BlockSpec((1, 3 * Hp), lambda c: (0, 0)),
            pl.BlockSpec((1, Hp), lambda c: (0, 0)),
        ],
        out_specs=pl.BlockSpec((chunk, Hp), lambda c: (c, 0)),
        scratch_shapes=[
            pltpu.VMEM((1, Hp), jnp.float32),          # recurrent hidden state
            pltpu.VMEM((chunk, 3 * Hp), jnp.float32),  # hoisted input-gate pre-activations
        ],
    )

    outs = pl.pallas_call(
        kernel,
        out_shape=jax.ShapeDtypeStruct((Tp, Hp), jnp.bfloat16),
        grid_spec=grid_spec,
        compiler_params=pltpu.CompilerParams(
            dimension_semantics=("arbitrary",),        # recurrence: sequential in time
            vmem_limit_bytes=32 * 1024 * 1024,
        ),
    )(x_seq, w_x, w_h, b_x, b_h, h0)

    outputs = outs[:T, :H].astype(jnp.float32)         # strip pad rows / lanes -> (T, H)
    final_h = outputs[T - 1:T]                         # GRU output == hidden state
    return outputs.reshape(T, 1, H), final_h.reshape(1, 1, H)


def encoder_rnn_forward(token_idx, hidden, params):
    """Single-step forward, matching PyTorch EncoderRNN.forward(input_, hidden)."""
    H = params["hidden_size"]
    outputs, final_h = encoder_rnn_sequence(
        jnp.asarray(token_idx, jnp.int32).reshape((1,)), hidden, params)
    return outputs.reshape(1, 1, H), final_h.reshape(1, 1, H)


# ----------------------------------------------------------------------------
# Parameter construction (PyTorch-equivalent init, packed into kernel layout)
# ----------------------------------------------------------------------------
def init_params(key, input_size, hidden_size):
    """nn.Embedding(V, H) weight ~ N(0,1); nn.GRU(H, H) params ~ U(-1/sqrt(H), 1/sqrt(H)).

    Kernel layout:
      emb_p : (V, Hp)    bf16, H columns + zero lane padding
      w_x   : (Hp, 3Hp)  bf16, W_ih^T with each gate block (r|z|n) padded to Hp lanes
      w_h   : (Hp, 3Hp)  bf16, W_hh^T, same padding
      b_x   : (1, 3Hp)   f32, b_ih gate-block padded
      b_h   : (1, 3Hp)   f32, b_hh gate-block padded
    """
    V, H = input_size, hidden_size
    Hp = 128 * pl.cdiv(H, 128)

    k_emb, k_wih, k_whh, k_bih, k_bhh = jax.random.split(key, 5)
    bound = 1.0 / jnp.sqrt(jnp.float32(H))

    emb = jax.random.normal(k_emb, (V, H), jnp.float32)
    w_ih = jax.random.uniform(k_wih, (3 * H, H), jnp.float32, -bound, bound)
    w_hh = jax.random.uniform(k_whh, (3 * H, H), jnp.float32, -bound, bound)
    b_ih = jax.random.uniform(k_bih, (3 * H,), jnp.float32, -bound, bound)
    b_hh = jax.random.uniform(k_bhh, (3 * H,), jnp.float32, -bound, bound)

    def pad_weight_t(w):           # (3H, H) PyTorch -> (Hp, 3Hp) transposed, gate padded
        wt = w.T                   # (H, 3H), gate order r|z|n along columns
        out = jnp.zeros((Hp, 3 * Hp), jnp.float32)
        for g in range(3):
            out = out.at[:H, g * Hp:g * Hp + H].set(wt[:, g * H:(g + 1) * H])
        return out

    def pad_bias(b):               # (3H,) -> (1, 3Hp), gate padded
        out = jnp.zeros((1, 3 * Hp), jnp.float32)
        for g in range(3):
            out = out.at[0, g * Hp:g * Hp + H].set(b[g * H:(g + 1) * H])
        return out

    emb_p = jnp.zeros((V, Hp), jnp.float32).at[:, :H].set(emb).astype(jnp.bfloat16)

    return {
        "hidden_size": H,
        "emb_p": emb_p,
        "w_x": pad_weight_t(w_ih).astype(jnp.bfloat16),
        "w_h": pad_weight_t(w_hh).astype(jnp.bfloat16),
        "b_x": pad_bias(b_ih),
        "b_h": pad_bias(b_hh),
        # original f32 PyTorch-layout params (for the loose sanity reference only)
        "embedding_f32": emb, "w_ih_f32": w_ih, "w_hh_f32": w_hh,
        "b_ih_f32": b_ih, "b_hh_f32": b_hh,
    }


# ----------------------------------------------------------------------------
# References
# ----------------------------------------------------------------------------
def _reference_sequence(tokens, hidden, params):
    """Pure-JAX reference mirroring the kernel math (bf16 weights/inputs, f32 gates)."""
    H = params["hidden_size"]
    emb = params["emb_p"].astype(jnp.float32)
    wx = params["w_x"].astype(jnp.float32)
    wh = params["w_h"].astype(jnp.float32)
    bx, bh = params["b_x"], params["b_h"]
    Hp = emb.shape[1]

    tokens = jnp.asarray(tokens, jnp.int32).reshape(-1)
    T = tokens.shape[0]
    h = jnp.zeros((1, Hp), jnp.float32).at[:, :H].set(hidden.reshape(1, H))

    outs = []
    for i in range(T):
        x = emb[tokens[i]].reshape(1, Hp)
        gx = x @ wx + bx
        gh = h.astype(jnp.bfloat16).astype(jnp.float32) @ wh + bh
        r = jax.nn.sigmoid(gx[:, 0:Hp] + gh[:, 0:Hp])
        z = jax.nn.sigmoid(gx[:, Hp:2 * Hp] + gh[:, Hp:2 * Hp])
        n = jnp.tanh(gx[:, 2 * Hp:3 * Hp] + r * gh[:, 2 * Hp:3 * Hp])
        h = (1.0 - z) * n + z * h
        outs.append(h[:, :H])
    outputs = jnp.concatenate(outs, axis=0)
    return outputs.reshape(T, 1, H), outputs[T - 1:T].reshape(1, 1, H)


def _reference_sequence_f32(tokens, hidden, params):
    """Full-f32 PyTorch-layout GRU reference (sanity check on the packing; bf16-loose)."""
    H = params["hidden_size"]
    emb, w_ih, w_hh = params["embedding_f32"], params["w_ih_f32"], params["w_hh_f32"]
    b_ih, b_hh = params["b_ih_f32"], params["b_hh_f32"]
    tokens = jnp.asarray(tokens, jnp.int32).reshape(-1)
    T = tokens.shape[0]
    h = hidden.reshape(1, H)
    outs = []
    for i in range(T):
        x = emb[tokens[i]].reshape(1, H)
        gi = x @ w_ih.T + b_ih
        gh = h @ w_hh.T + b_hh
        i_r, i_z, i_n = gi[:, :H], gi[:, H:2 * H], gi[:, 2 * H:]
        h_r, h_z, h_n = gh[:, :H], gh[:, H:2 * H], gh[:, 2 * H:]
        r = jax.nn.sigmoid(i_r + h_r)
        z = jax.nn.sigmoid(i_z + h_z)
        n = jnp.tanh(i_n + r * h_n)
        h = (1.0 - z) * n + z * h
        outs.append(h)
    outputs = jnp.concatenate(outs, axis=0)
    return outputs.reshape(T, 1, H), outputs[T - 1:T].reshape(1, 1, H)


# ----------------------------------------------------------------------------
# Demo / self-test
# ----------------------------------------------------------------------------
if __name__ == "__main__":
    input_size = 16     # small synthetic source-language vocab
    hidden_size = 32    # small hidden / embedding dim (padded to 128 lanes in-kernel)
    seq_len = 11        # not a multiple of CHUNK -> exercises pad rows + chunk carry
    chunk = 8

    key = jax.random.PRNGKey(0)
    k_params, k_tok = jax.random.split(key)
    params = init_params(k_params, input_size, hidden_size)

    tokens = jax.random.randint(k_tok, (seq_len,), 0, input_size, dtype=jnp.int32)
    hidden0 = jnp.zeros((1, 1, hidden_size), dtype=jnp.float32)   # initHidden()

    # Single-step API (matches EncoderRNN.forward semantics exactly).
    out1, h1 = encoder_rnn_forward(tokens[0], hidden0, params)
    # Fused full-sequence encode (one pallas_call, CHUNK tokens per grid step).
    outs_seq, h_final = encoder_rnn_sequence(tokens, hidden0, params, chunk=chunk)
    out1, h1, outs_seq, h_final = jax.block_until_ready((out1, h1, outs_seq, h_final))

    assert out1.shape == (1, 1, hidden_size) and h1.shape == (1, 1, hidden_size)
    assert outs_seq.shape == (seq_len, 1, hidden_size) and h_final.shape == (1, 1, hidden_size)

    # Tight-ish check against the bf16-mirrored reference (kernel output is bf16-rounded).
    ref_outs, ref_h = _reference_sequence(tokens, hidden0, params)
    assert jnp.allclose(outs_seq, ref_outs, atol=1.5e-2, rtol=1.5e-2)
    assert jnp.allclose(h_final, ref_h, atol=1.5e-2, rtol=1.5e-2)
    assert jnp.allclose(out1, ref_outs[0:1], atol=1.5e-2, rtol=1.5e-2)
    assert jnp.allclose(h1, ref_outs[0:1], atol=1.5e-2, rtol=1.5e-2)

    # Loose sanity check against the full-f32 PyTorch-layout GRU (bf16 weight rounding).
    ref_outs32, ref_h32 = _reference_sequence_f32(tokens, hidden0, params)
    assert jnp.allclose(outs_seq, ref_outs32, atol=6e-2, rtol=6e-2)
    assert jnp.allclose(h_final, ref_h32, atol=6e-2, rtol=6e-2)

    print("KERNEL_OK")
</pallas_src>

<mosaic_0001>
module attributes {stable_mosaic.version = 11 : i64} {
  func.func @kernel(%arg0: i32, %arg1: memref<8x128xbf16, #tpu.memory_space<vmem>>, %arg2: memref<128x384xbf16, #tpu.memory_space<vmem>>, %arg3: memref<128x384xbf16, #tpu.memory_space<vmem>>, %arg4: memref<1x384xf32, #tpu.memory_space<vmem>>, %arg5: memref<1x384xf32, #tpu.memory_space<vmem>>, %arg6: memref<1x128xf32, #tpu.memory_space<vmem>>, %arg7: memref<8x128xbf16, #tpu.memory_space<vmem>>, %arg8: memref<1x128xf32, #tpu.memory_space<vmem>>, %arg9: memref<8x384xf32, #tpu.memory_space<vmem>>) attributes {dimension_semantics = [#tpu.dimension_semantics<arbitrary>], iteration_bounds = array<i64: 1>, scalar_prefetch = 0 : i64, scratch_operands = 2 : i64, tpu.core_type = #tpu.core_type<tc>, window_params = [{transform_indices = @transform_0, window_bounds = array<i64: 8, 128>}, {pipeline_mode = #tpu.pipeline_mode<synchronous>, transform_indices = @transform_1, window_bounds = array<i64: 128, 384>}, {pipeline_mode = #tpu.pipeline_mode<synchronous>, transform_indices = @transform_2, window_bounds = array<i64: 128, 384>}, {pipeline_mode = #tpu.pipeline_mode<synchronous>, transform_indices = @transform_3, window_bounds = array<i64: 1, 384>}, {pipeline_mode = #tpu.pipeline_mode<synchronous>, transform_indices = @transform_4, window_bounds = array<i64: 1, 384>}, {pipeline_mode = #tpu.pipeline_mode<synchronous>, transform_indices = @transform_5, window_bounds = array<i64: 1, 128>}, {transform_indices = @transform_6, window_bounds = array<i64: 8, 128>}]} {
    %c0_i32 = arith.constant 0 : i32
    %0 = arith.cmpi eq, %arg0, %c0_i32 : i32
    %1 = arith.extui %0 : i1 to i32
    %c0_i32_0 = arith.constant 0 : i32
    %2 = arith.cmpi ne, %1, %c0_i32_0 : i32
    scf.if %2 {
      %c0_65 = arith.constant 0 : index
      %c0_66 = arith.constant 0 : index
      %286 = vector.load %arg6[%c0_65, %c0_66] : memref<1x128xf32, #tpu.memory_space<vmem>>, vector<1x128xf32>
      %c0_67 = arith.constant 0 : index
      %c0_68 = arith.constant 0 : index
      %287 = vector.load %arg8[%c0_67, %c0_68] : memref<1x128xf32, #tpu.memory_space<vmem>>, vector<1x128xf32>
      tpu.vector_store %arg8[%c0_67, %c0_68], %286 {strides = array<i32>} : memref<1x128xf32, #tpu.memory_space<vmem>>, vector<1x128xf32>,
    } else {
    }
    %c0 = arith.constant 0 : index
    %c0_1 = arith.constant 0 : index
    %3 = vector.load %arg1[%c0, %c0_1] : memref<8x128xbf16, #tpu.memory_space<vmem>>, vector<8x128xbf16>
    %c0_2 = arith.constant 0 : index
    %c0_3 = arith.constant 0 : index
    %4 = vector.load %arg2[%c0_2, %c0_3] : memref<128x384xbf16, #tpu.memory_space<vmem>>, vector<128x384xbf16>
    %cst = arith.constant dense<0.000000e+00> : vector<8x384xf32>
    %5 = tpu.matmul %3, %4, %cst {dimension_numbers = #tpu.dot_dimension_numbers<[1], [0], [0], [1], [0, 0, 1, 1], [], []>} : vector<8x128xbf16>, vector<128x384xbf16>, vector<8x384xf32> -> vector<8x384xf32>
    %c0_4 = arith.constant 0 : index
    %c0_5 = arith.constant 0 : index
    %6 = vector.load %arg4[%c0_4, %c0_5] : memref<1x384xf32, #tpu.memory_space<vmem>>, vector<1x384xf32>
    %7 = vector.broadcast %6 : vector<1x384xf32> to vector<8x384xf32>
    %8 = arith.addf %5, %7 : vector<8x384xf32>
    %c0_6 = arith.constant 0 : index
    %c0_7 = arith.constant 0 : index
    %9 = vector.load %arg9[%c0_6, %c0_7] : memref<8x384xf32, #tpu.memory_space<vmem>>, vector<8x384xf32>
    tpu.vector_store %arg9[%c0_6, %c0_7], %8 {strides = array<i32>} : memref<8x384xf32, #tpu.memory_space<vmem>>, vector<8x384xf32>,
    %c0_8 = arith.constant 0 : index
    %c0_9 = arith.constant 0 : index
    %10 = vector.load %arg3[%c0_8, %c0_9] : memref<128x384xbf16, #tpu.memory_space<vmem>>, vector<128x384xbf16>
    %c0_10 = arith.constant 0 : index
    %c0_11 = arith.constant 0 : index
    %11 = vector.load %arg5[%c0_10, %c0_11] : memref<1x384xf32, #tpu.memory_space<vmem>>, vector<1x384xf32>
    %c0_12 = arith.constant 0 : index
    %c0_13 = arith.constant 0 : index
    %12 = vector.load %arg8[%c0_12, %c0_13] : memref<1x128xf32, #tpu.memory_space<vmem>>, vector<1x128xf32>
    %c0_i32_14 = arith.constant 0 : i32
    %13 = arith.index_cast %c0_i32_14 : i32 to index
    %c0_15 = arith.constant 0 : index
    %14 = vector.load %arg9[%13, %c0_15] : memref<8x384xf32, #tpu.memory_space<vmem>>, vector<1x384xf32>
    %15 = arith.truncf %12 : vector<1x128xf32> to vector<1x128xbf16>
    %cst_16 = arith.constant dense<0.000000e+00> : vector<1x384xf32>
    %16 = tpu.matmul %15, %10, %cst_16 {dimension_numbers = #tpu.dot_dimension_numbers<[1], [0], [0], [1], [0, 0, 1, 1], [], []>} : vector<1x128xbf16>, vector<128x384xbf16>, vector<1x384xf32> -> vector<1x384xf32>
    %17 = arith.addf %16, %11 : vector<1x384xf32>
    %18 = vector.extract_strided_slice %14 {offsets = [0, 0], sizes = [1, 128], strides = [1, 1]} : vector<1x384xf32> to vector<1x128xf32>
    %19 = vector.extract_strided_slice %17 {offsets = [0, 0], sizes = [1, 128], strides = [1, 1]} : vector<1x384xf32> to vector<1x128xf32>
    %20 = arith.addf %18, %19 : vector<1x128xf32>
    %21 = arith.negf %20 : vector<1x128xf32>
    %22 = math.exp %21 : vector<1x128xf32>
    %cst_17 = arith.constant 1.000000e+00 : f32
    %23 = vector.broadcast %cst_17 : f32 to vector<1x128xf32>
    %24 = arith.addf %23, %22 : vector<1x128xf32>
    %25 = arith.divf %23, %24 : vector<1x128xf32>
    %26 = vector.extract_strided_slice %14 {offsets = [0, 128], sizes = [1, 128], strides = [1, 1]} : vector<1x384xf32> to vector<1x128xf32>
    %27 = vector.extract_strided_slice %17 {offsets = [0, 128], sizes = [1, 128], strides = [1, 1]} : vector<1x384xf32> to vector<1x128xf32>
    %28 = arith.addf %26, %27 : vector<1x128xf32>
    %29 = arith.negf %28 : vector<1x128xf32>
    %30 = math.exp %29 : vector<1x128xf32>
    %cst_18 = arith.constant 1.000000e+00 : f32
    %31 = vector.broadcast %cst_18 : f32 to vector<1x128xf32>
    %32 = arith.addf %31, %30 : vector<1x128xf32>
    %33 = arith.divf %31, %32 : vector<1x128xf32>
    %34 = vector.extract_strided_slice %14 {offsets = [0, 256], sizes = [1, 128], strides = [1, 1]} : vector<1x384xf32> to vector<1x128xf32>
    %35 = vector.extract_strided_slice %17 {offsets = [0, 256], sizes = [1, 128], strides = [1, 1]} : vector<1x384xf32> to vector<1x128xf32>
    %36 = arith.mulf %25, %35 : vector<1x128xf32>
    %37 = arith.addf %34, %36 : vector<1x128xf32>
    %38 = math.tanh %37 : vector<1x128xf32>
    %cst_19 = arith.constant 1.000000e+00 : f32
    %39 = vector.broadcast %cst_19 : f32 to vector<1x128xf32>
    %40 = arith.subf %39, %33 : vector<1x128xf32>
    %41 = arith.mulf %40, %38 : vector<1x128xf32>
    %42 = arith.mulf %33, %12 : vector<1x128xf32>
    %43 = arith.addf %41, %42 : vector<1x128xf32>
    %44 = arith.truncf %43 : vector<1x128xf32> to vector<1x128xbf16>
    %45 = arith.index_cast %c0_i32_14 : i32 to index
    %c0_20 = arith.constant 0 : index
    %46 = vector.load %arg7[%45, %c0_20] : memref<8x128xbf16, #tpu.memory_space<vmem>>, vector<1x128xbf16>
    tpu.vector_store %arg7[%45, %c0_20], %44 {strides = array<i32>} : memref<8x128xbf16, #tpu.memory_space<vmem>>, vector<1x128xbf16>,
    %c1_i32 = arith.constant 1 : i32
    %47 = arith.index_cast %c1_i32 : i32 to index
    %c0_21 = arith.constant 0 : index
    %48 = vector.load %arg9[%47, %c0_21] : memref<8x384xf32, #tpu.memory_space<vmem>>, vector<1x384xf32>
    %49 = arith.truncf %43 : vector<1x128xf32> to vector<1x128xbf16>
    %cst_22 = arith.constant dense<0.000000e+00> : vector<1x384xf32>
    %50 = tpu.matmul %49, %10, %cst_22 {dimension_numbers = #tpu.dot_dimension_numbers<[1], [0], [0], [1], [0, 0, 1, 1], [], []>} : vector<1x128xbf16>, vector<128x384xbf16>, vector<1x384xf32> -> vector<1x384xf32>
    %51 = arith.addf %50, %11 : vector<1x384xf32>
    %52 = vector.extract_strided_slice %48 {offsets = [0, 0], sizes = [1, 128], strides = [1, 1]} : vector<1x384xf32> to vector<1x128xf32>
    %53 = vector.extract_strided_slice %51 {offsets = [0, 0], sizes = [1, 128], strides = [1, 1]} : vector<1x384xf32> to vector<1x128xf32>
    %54 = arith.addf %52, %53 : vector<1x128xf32>
    %55 = arith.negf %54 : vector<1x128xf32>
    %56 = math.exp %55 : vector<1x128xf32>
    %cst_23 = arith.constant 1.000000e+00 : f32
    %57 = vector.broadcast %cst_23 : f32 to vector<1x128xf32>
    %58 = arith.addf %57, %56 : vector<1x128xf32>
    %59 = arith.divf %57, %58 : vector<1x128xf32>
    %60 = vector.extract_strided_slice %48 {offsets = [0, 128], sizes = [1, 128], strides = [1, 1]} : vector<1x384xf32> to vector<1x128xf32>
    %61 = vector.extract_strided_slice %51 {offsets = [0, 128], sizes = [1, 128], strides = [1, 1]} : vector<1x384xf32> to vector<1x128xf32>
    %62 = arith.addf %60, %61 : vector<1x128xf32>
    %63 = arith.negf %62 : vector<1x128xf32>
    %64 = math.exp %63 : vector<1x128xf32>
    %cst_24 = arith.constant 1.000000e+00 : f32
    %65 = vector.broadcast %cst_24 : f32 to vector<1x128xf32>
    %66 = arith.addf %65, %64 : vector<1x128xf32>
    %67 = arith.divf %65, %66 : vector<1x128xf32>
    %68 = vector.extract_strided_slice %48 {offsets = [0, 256], sizes = [1, 128], strides = [1, 1]} : vector<1x384xf32> to vector<1x128xf32>
    %69 = vector.extract_strided_slice %51 {offsets = [0, 256], sizes = [1, 128], strides = [1, 1]} : vector<1x384xf32> to vector<1x128xf32>
    %70 = arith.mulf %59, %69 : vector<1x128xf32>
    %71 = arith.addf %68, %70 : vector<1x128xf32>
    %72 = math.tanh %71 : vector<1x128xf32>
    %cst_25 = arith.constant 1.000000e+00 : f32
    %73 = vector.broadcast %cst_25 : f32 to vector<1x128xf32>
    %74 = arith.subf %73, %67 : vector<1x128xf32>
    %75 = arith.mulf %74, %72 : vector<1x128xf32>
    %76 = arith.mulf %67, %43 : vector<1x128xf32>
    %77 = arith.addf %75, %76 : vector<1x128xf32>
    %78 = arith.truncf %77 : vector<1x128xf32> to vector<1x128xbf16>
    %79 = arith.index_cast %c1_i32 : i32 to index
    %c0_26 = arith.constant 0 : index
    %80 = vector.load %arg7[%79, %c0_26] : memref<8x128xbf16, #tpu.memory_space<vmem>>, vector<1x128xbf16>
    tpu.vector_store %arg7[%79, %c0_26], %78 {strides = array<i32>} : memref<8x128xbf16, #tpu.memory_space<vmem>>, vector<1x128xbf16>,
    %c2_i32 = arith.constant 2 : i32
    %81 = arith.index_cast %c2_i32 : i32 to index
    %c0_27 = arith.constant 0 : index
    %82 = vector.load %arg9[%81, %c0_27] : memref<8x384xf32, #tpu.memory_space<vmem>>, vector<1x384xf32>
    %83 = arith.truncf %77 : vector<1x128xf32> to vector<1x128xbf16>
    %cst_28 = arith.constant dense<0.000000e+00> : vector<1x384xf32>
    %84 = tpu.matmul %83, %10, %cst_28 {dimension_numbers = #tpu.dot_dimension_numbers<[1], [0], [0], [1], [0, 0, 1, 1], [], []>} : vector<1x128xbf16>, vector<128x384xbf16>, vector<1x384xf32> -> vector<1x384xf32>
    %85 = arith.addf %84, %11 : vector<1x384xf32>
    %86 = vector.extract_strided_slice %82 {offsets = [0, 0], sizes = [1, 128], strides = [1, 1]} : vector<1x384xf32> to vector<1x128xf32>
    %87 = vector.extract_strided_slice %85 {offsets = [0, 0], sizes = [1, 128], strides = [1, 1]} : vector<1x384xf32> to vector<1x128xf32>
    %88 = arith.addf %86, %87 : vector<1x128xf32>
    %89 = arith.negf %88 : vector<1x128xf32>
    %90 = math.exp %89 : vector<1x128xf32>
    %cst_29 = arith.constant 1.000000e+00 : f32
    %91 = vector.broadcast %cst_29 : f32 to vector<1x128xf32>
    %92 = arith.addf %91, %90 : vector<1x128xf32>
    %93 = arith.divf %91, %92 : vector<1x128xf32>
    %94 = vector.extract_strided_slice %82 {offsets = [0, 128], sizes = [1, 128], strides = [1, 1]} : vector<1x384xf32> to vector<1x128xf32>
    %95 = vector.extract_strided_slice %85 {offsets = [0, 128], sizes = [1, 128], strides = [1, 1]} : vector<1x384xf32> to vector<1x128xf32>
    %96 = arith.addf %94, %95 : vector<1x128xf32>
    %97 = arith.negf %96 : vector<1x128xf32>
    %98 = math.exp %97 : vector<1x128xf32>
    %cst_30 = arith.constant 1.000000e+00 : f32
    %99 = vector.broadcast %cst_30 : f32 to vector<1x128xf32>
    %100 = arith.addf %99, %98 : vector<1x128xf32>
    %101 = arith.divf %99, %100 : vector<1x128xf32>
    %102 = vector.extract_strided_slice %82 {offsets = [0, 256], sizes = [1, 128], strides = [1, 1]} : vector<1x384xf32> to vector<1x128xf32>
    %103 = vector.extract_strided_slice %85 {offsets = [0, 256], sizes = [1, 128], strides = [1, 1]} : vector<1x384xf32> to vector<1x128xf32>
    %104 = arith.mulf %93, %103 : vector<1x128xf32>
    %105 = arith.addf %102, %104 : vector<1x128xf32>
    %106 = math.tanh %105 : vector<1x128xf32>
    %cst_31 = arith.constant 1.000000e+00 : f32
    %107 = vector.broadcast %cst_31 : f32 to vector<1x128xf32>
    %108 = arith.subf %107, %101 : vector<1x128xf32>
    %109 = arith.mulf %108, %106 : vector<1x128xf32>
    %110 = arith.mulf %101, %77 : vector<1x128xf32>
    %111 = arith.addf %109, %110 : vector<1x128xf32>
    %112 = arith.truncf %111 : vector<1x128xf32> to vector<1x128xbf16>
    %113 = arith.index_cast %c2_i32 : i32 to index
    %c0_32 = arith.constant 0 : index
    %114 = vector.load %arg7[%113, %c0_32] : memref<8x128xbf16, #tpu.memory_space<vmem>>, vector<1x128xbf16>
    tpu.vector_store %arg7[%113, %c0_32], %112 {strides = array<i32>} : memref<8x128xbf16, #tpu.memory_space<vmem>>, vector<1x128xbf16>,
    %c3_i32 = arith.constant 3 : i32
    %115 = arith.index_cast %c3_i32 : i32 to index
    %c0_33 = arith.constant 0 : index
    %116 = vector.load %arg9[%115, %c0_33] : memref<8x384xf32, #tpu.memory_space<vmem>>, vector<1x384xf32>
    %117 = arith.truncf %111 : vector<1x128xf32> to vector<1x128xbf16>
    %cst_34 = arith.constant dense<0.000000e+00> : vector<1x384xf32>
    %118 = tpu.matmul %117, %10, %cst_34 {dimension_numbers = #tpu.dot_dimension_numbers<[1], [0], [0], [1], [0, 0, 1, 1], [], []>} : vector<1x128xbf16>, vector<128x384xbf16>, vector<1x384xf32> -> vector<1x384xf32>
    %119 = arith.addf %118, %11 : vector<1x384xf32>
    %120 = vector.extract_strided_slice %116 {offsets = [0, 0], sizes = [1, 128], strides = [1, 1]} : vector<1x384xf32> to vector<1x128xf32>
    %121 = vector.extract_strided_slice %119 {offsets = [0, 0], sizes = [1, 128], strides = [1, 1]} : vector<1x384xf32> to vector<1x128xf32>
    %122 = arith.addf %120, %121 : vector<1x128xf32>
    %123 = arith.negf %122 : vector<1x128xf32>
    %124 = math.exp %123 : vector<1x128xf32>
    %cst_35 = arith.constant 1.000000e+00 : f32
    %125 = vector.broadcast %cst_35 : f32 to vector<1x128xf32>
    %126 = arith.addf %125, %124 : vector<1x128xf32>
    %127 = arith.divf %125, %126 : vector<1x128xf32>
    %128 = vector.extract_strided_slice %116 {offsets = [0, 128], sizes = [1, 128], strides = [1, 1]} : vector<1x384xf32> to vector<1x128xf32>
    %129 = vector.extract_strided_slice %119 {offsets = [0, 128], sizes = [1, 128], strides = [1, 1]} : vector<1x384xf32> to vector<1x128xf32>
    %130 = arith.addf %128, %129 : vector<1x128xf32>
    %131 = arith.negf %130 : vector<1x128xf32>
    %132 = math.exp %131 : vector<1x128xf32>
    %cst_36 = arith.constant 1.000000e+00 : f32
    %133 = vector.broadcast %cst_36 : f32 to vector<1x128xf32>
    %134 = arith.addf %133, %132 : vector<1x128xf32>
    %135 = arith.divf %133, %134 : vector<1x128xf32>
    %136 = vector.extract_strided_slice %116 {offsets = [0, 256], sizes = [1, 128], strides = [1, 1]} : vector<1x384xf32> to vector<1x128xf32>
    %137 = vector.extract_strided_slice %119 {offsets = [0, 256], sizes = [1, 128], strides = [1, 1]} : vector<1x384xf32> to vector<1x128xf32>
    %138 = arith.mulf %127, %137 : vector<1x128xf32>
    %139 = arith.addf %136, %138 : vector<1x128xf32>
    %140 = math.tanh %139 : vector<1x128xf32>
    %cst_37 = arith.constant 1.000000e+00 : f32
    %141 = vector.broadcast %cst_37 : f32 to vector<1x128xf32>
    %142 = arith.subf %141, %135 : vector<1x128xf32>
    %143 = arith.mulf %142, %140 : vector<1x128xf32>
    %144 = arith.mulf %135, %111 : vector<1x128xf32>
    %145 = arith.addf %143, %144 : vector<1x128xf32>
    %146 = arith.truncf %145 : vector<1x128xf32> to vector<1x128xbf16>
    %147 = arith.index_cast %c3_i32 : i32 to index
    %c0_38 = arith.constant 0 : index
    %148 = vector.load %arg7[%147, %c0_38] : memref<8x128xbf16, #tpu.memory_space<vmem>>, vector<1x128xbf16>
    tpu.vector_store %arg7[%147, %c0_38], %146 {strides = array<i32>} : memref<8x128xbf16, #tpu.memory_space<vmem>>, vector<1x128xbf16>,
    %c4_i32 = arith.constant 4 : i32
    %149 = arith.index_cast %c4_i32 : i32 to index
    %c0_39 = arith.constant 0 : index
    %150 = vector.load %arg9[%149, %c0_39] : memref<8x384xf32, #tpu.memory_space<vmem>>, vector<1x384xf32>
    %151 = arith.truncf %145 : vector<1x128xf32> to vector<1x128xbf16>
    %cst_40 = arith.constant dense<0.000000e+00> : vector<1x384xf32>
    %152 = tpu.matmul %151, %10, %cst_40 {dimension_numbers = #tpu.dot_dimension_numbers<[1], [0], [0], [1], [0, 0, 1, 1], [], []>} : vector<1x128xbf16>, vector<128x384xbf16>, vector<1x384xf32> -> vector<1x384xf32>
    %153 = arith.addf %152, %11 : vector<1x384xf32>
    %154 = vector.extract_strided_slice %150 {offsets = [0, 0], sizes = [1, 128], strides = [1, 1]} : vector<1x384xf32> to vector<1x128xf32>
    %155 = vector.extract_strided_slice %153 {offsets = [0, 0], sizes = [1, 128], strides = [1, 1]} : vector<1x384xf32> to vector<1x128xf32>
    %156 = arith.addf %154, %155 : vector<1x128xf32>
    %157 = arith.negf %156 : vector<1x128xf32>
    %158 = math.exp %157 : vector<1x128xf32>
    %cst_41 = arith.constant 1.000000e+00 : f32
    %159 = vector.broadcast %cst_41 : f32 to vector<1x128xf32>
    %160 = arith.addf %159, %158 : vector<1x128xf32>
    %161 = arith.divf %159, %160 : vector<1x128xf32>
    %162 = vector.extract_strided_slice %150 {offsets = [0, 128], sizes = [1, 128], strides = [1, 1]} : vector<1x384xf32> to vector<1x128xf32>
    %163 = vector.extract_strided_slice %153 {offsets = [0, 128], sizes = [1, 128], strides = [1, 1]} : vector<1x384xf32> to vector<1x128xf32>
    %164 = arith.addf %162, %163 : vector<1x128xf32>
    %165 = arith.negf %164 : vector<1x128xf32>
    %166 = math.exp %165 : vector<1x128xf32>
    %cst_42 = arith.constant 1.000000e+00 : f32
    %167 = vector.broadcast %cst_42 : f32 to vector<1x128xf32>
    %168 = arith.addf %167, %166 : vector<1x128xf32>
    %169 = arith.divf %167, %168 : vector<1x128xf32>
    %170 = vector.extract_strided_slice %150 {offsets = [0, 256], sizes = [1, 128], strides = [1, 1]} : vector<1x384xf32> to vector<1x128xf32>
    %171 = vector.extract_strided_slice %153 {offsets = [0, 256], sizes = [1, 128], strides = [1, 1]} : vector<1x384xf32> to vector<1x128xf32>
    %172 = arith.mulf %161, %171 : vector<1x128xf32>
    %173 = arith.addf %170, %172 : vector<1x128xf32>
    %174 = math.tanh %173 : vector<1x128xf32>
    %cst_43 = arith.constant 1.000000e+00 : f32
    %175 = vector.broadcast %cst_43 : f32 to vector<1x128xf32>
    %176 = arith.subf %175, %169 : vector<1x128xf32>
    %177 = arith.mulf %176, %174 : vector<1x128xf32>
    %178 = arith.mulf %169, %145 : vector<1x128xf32>
    %179 = arith.addf %177, %178 : vector<1x128xf32>
    %180 = arith.truncf %179 : vector<1x128xf32> to vector<1x128xbf16>
    %181 = arith.index_cast %c4_i32 : i32 to index
    %c0_44 = arith.constant 0 : index
    %182 = vector.load %arg7[%181, %c0_44] : memref<8x128xbf16, #tpu.memory_space<vmem>>, vector<1x128xbf16>
    tpu.vector_store %arg7[%181, %c0_44], %180 {strides = array<i32>} : memref<8x128xbf16, #tpu.memory_space<vmem>>, vector<1x128xbf16>,
    %c5_i32 = arith.constant 5 : i32
    %183 = arith.index_cast %c5_i32 : i32 to index
    %c0_45 = arith.constant 0 : index
    %184 = vector.load %arg9[%183, %c0_45] : memref<8x384xf32, #tpu.memory_space<vmem>>, vector<1x384xf32>
    %185 = arith.truncf %179 : vector<1x128xf32> to vector<1x128xbf16>
    %cst_46 = arith.constant dense<0.000000e+00> : vector<1x384xf32>
    %186 = tpu.matmul %185, %10, %cst_46 {dimension_numbers = #tpu.dot_dimension_numbers<[1], [0], [0], [1], [0, 0, 1, 1], [], []>} : vector<1x128xbf16>, vector<128x384xbf16>, vector<1x384xf32> -> vector<1x384xf32>
    %187 = arith.addf %186, %11 : vector<1x384xf32>
    %188 = vector.extract_strided_slice %184 {offsets = [0, 0], sizes = [1, 128], strides = [1, 1]} : vector<1x384xf32> to vector<1x128xf32>
    %189 = vector.extract_strided_slice %187 {offsets = [0, 0], sizes = [1, 128], strides = [1, 1]} : vector<1x384xf32> to vector<1x128xf32>
    %190 = arith.addf %188, %189 : vector<1x128xf32>
    %191 = arith.negf %190 : vector<1x128xf32>
    %192 = math.exp %191 : vector<1x128xf32>
    %cst_47 = arith.constant 1.000000e+00 : f32
    %193 = vector.broadcast %cst_47 : f32 to vector<1x128xf32>
    %194 = arith.addf %193, %192 : vector<1x128xf32>
    %195 = arith.divf %193, %194 : vector<1x128xf32>
    %196 = vector.extract_strided_slice %184 {offsets = [0, 128], sizes = [1, 128], strides = [1, 1]} : vector<1x384xf32> to vector<1x128xf32>
    %197 = vector.extract_strided_slice %187 {offsets = [0, 128], sizes = [1, 128], strides = [1, 1]} : vector<1x384xf32> to vector<1x128xf32>
    %198 = arith.addf %196, %197 : vector<1x128xf32>
    %199 = arith.negf %198 : vector<1x128xf32>
    %200 = math.exp %199 : vector<1x128xf32>
    %cst_48 = arith.constant 1.000000e+00 : f32
    %201 = vector.broadcast %cst_48 : f32 to vector<1x128xf32>
    %202 = arith.addf %201, %200 : vector<1x128xf32>
    %203 = arith.divf %201, %202 : vector<1x128xf32>
    %204 = vector.extract_strided_slice %184 {offsets = [0, 256], sizes = [1, 128], strides = [1, 1]} : vector<1x384xf32> to vector<1x128xf32>
    %205 = vector.extract_strided_slice %187 {offsets = [0, 256], sizes = [1, 128], strides = [1, 1]} : vector<1x384xf32> to vector<1x128xf32>
    %206 = arith.mulf %195, %205 : vector<1x128xf32>
    %207 = arith.addf %204, %206 : vector<1x128xf32>
    %208 = math.tanh %207 : vector<1x128xf32>
    %cst_49 = arith.constant 1.000000e+00 : f32
    %209 = vector.broadcast %cst_49 : f32 to vector<1x128xf32>
    %210 = arith.subf %209, %203 : vector<1x128xf32>
    %211 = arith.mulf %210, %208 : vector<1x128xf32>
    %212 = arith.mulf %203, %179 : vector<1x128xf32>
    %213 = arith.addf %211, %212 : vector<1x128xf32>
    %214 = arith.truncf %213 : vector<1x128xf32> to vector<1x128xbf16>
    %215 = arith.index_cast %c5_i32 : i32 to index
    %c0_50 = arith.constant 0 : index
    %216 = vector.load %arg7[%215, %c0_50] : memref<8x128xbf16, #tpu.memory_space<vmem>>, vector<1x128xbf16>
    tpu.vector_store %arg7[%215, %c0_50], %214 {strides = array<i32>} : memref<8x128xbf16, #tpu.memory_space<vmem>>, vector<1x128xbf16>,
    %c6_i32 = arith.constant 6 : i32
    %217 = arith.index_cast %c6_i32 : i32 to index
    %c0_51 = arith.constant 0 : index
    %218 = vector.load %arg9[%217, %c0_51] : memref<8x384xf32, #tpu.memory_space<vmem>>, vector<1x384xf32>
    %219 = arith.truncf %213 : vector<1x128xf32> to vector<1x128xbf16>
    %cst_52 = arith.constant dense<0.000000e+00> : vector<1x384xf32>
    %220 = tpu.matmul %219, %10, %cst_52 {dimension_numbers = #tpu.dot_dimension_numbers<[1], [0], [0], [1], [0, 0, 1, 1], [], []>} : vector<1x128xbf16>, vector<128x384xbf16>, vector<1x384xf32> -> vector<1x384xf32>
    %221 = arith.addf %220, %11 : vector<1x384xf32>
    %222 = vector.extract_strided_slice %218 {offsets = [0, 0], sizes = [1, 128], strides = [1, 1]} : vector<1x384xf32> to vector<1x128xf32>
    %223 = vector.extract_strided_slice %221 {offsets = [0, 0], sizes = [1, 128], strides = [1, 1]} : vector<1x384xf32> to vector<1x128xf32>
    %224 = arith.addf %222, %223 : vector<1x128xf32>
    %225 = arith.negf %224 : vector<1x128xf32>
    %226 = math.exp %225 : vector<1x128xf32>
    %cst_53 = arith.constant 1.000000e+00 : f32
    %227 = vector.broadcast %cst_53 : f32 to vector<1x128xf32>
    %228 = arith.addf %227, %226 : vector<1x128xf32>
    %229 = arith.divf %227, %228 : vector<1x128xf32>
    %230 = vector.extract_strided_slice %218 {offsets = [0, 128], sizes = [1, 128], strides = [1, 1]} : vector<1x384xf32> to vector<1x128xf32>
    %231 = vector.extract_strided_slice %221 {offsets = [0, 128], sizes = [1, 128], strides = [1, 1]} : vector<1x384xf32> to vector<1x128xf32>
    %232 = arith.addf %230, %231 : vector<1x128xf32>
    %233 = arith.negf %232 : vector<1x128xf32>
    %234 = math.exp %233 : vector<1x128xf32>
    %cst_54 = arith.constant 1.000000e+00 : f32
    %235 = vector.broadcast %cst_54 : f32 to vector<1x128xf32>
    %236 = arith.addf %235, %234 : vector<1x128xf32>
    %237 = arith.divf %235, %236 : vector<1x128xf32>
    %238 = vector.extract_strided_slice %218 {offsets = [0, 256], sizes = [1, 128], strides = [1, 1]} : vector<1x384xf32> to vector<1x128xf32>
    %239 = vector.extract_strided_slice %221 {offsets = [0, 256], sizes = [1, 128], strides = [1, 1]} : vector<1x384xf32> to vector<1x128xf32>
    %240 = arith.mulf %229, %239 : vector<1x128xf32>
    %241 = arith.addf %238, %240 : vector<1x128xf32>
    %242 = math.tanh %241 : vector<1x128xf32>
    %cst_55 = arith.constant 1.000000e+00 : f32
    %243 = vector.broadcast %cst_55 : f32 to vector<1x128xf32>
    %244 = arith.subf %243, %237 : vector<1x128xf32>
    %245 = arith.mulf %244, %242 : vector<1x128xf32>
    %246 = arith.mulf %237, %213 : vector<1x128xf32>
    %247 = arith.addf %245, %246 : vector<1x128xf32>
    %248 = arith.truncf %247 : vector<1x128xf32> to vector<1x128xbf16>
    %249 = arith.index_cast %c6_i32 : i32 to index
    %c0_56 = arith.constant 0 : index
    %250 = vector.load %arg7[%249, %c0_56] : memref<8x128xbf16, #tpu.memory_space<vmem>>, vector<1x128xbf16>
    tpu.vector_store %arg7[%249, %c0_56], %248 {strides = array<i32>} : memref<8x128xbf16, #tpu.memory_space<vmem>>, vector<1x128xbf16>,
    %c7_i32 = arith.constant 7 : i32
    %251 = arith.index_cast %c7_i32 : i32 to index
    %c0_57 = arith.constant 0 : index
    %252 = vector.load %arg9[%251, %c0_57] : memref<8x384xf32, #tpu.memory_space<vmem>>, vector<1x384xf32>
    %253 = arith.truncf %247 : vector<1x128xf32> to vector<1x128xbf16>
    %cst_58 = arith.constant dense<0.000000e+00> : vector<1x384xf32>
    %254 = tpu.matmul %253, %10, %cst_58 {dimension_numbers = #tpu.dot_dimension_numbers<[1], [0], [0], [1], [0, 0, 1, 1], [], []>} : vector<1x128xbf16>, vector<128x384xbf16>, vector<1x384xf32> -> vector<1x384xf32>
    %255 = arith.addf %254, %11 : vector<1x384xf32>
    %256 = vector.extract_strided_slice %252 {offsets = [0, 0], sizes = [1, 128], strides = [1, 1]} : vector<1x384xf32> to vector<1x128xf32>
    %257 = vector.extract_strided_slice %255 {offsets = [0, 0], sizes = [1, 128], strides = [1, 1]} : vector<1x384xf32> to vector<1x128xf32>
    %258 = arith.addf %256, %257 : vector<1x128xf32>
    %259 = arith.negf %258 : vector<1x128xf32>
    %260 = math.exp %259 : vector<1x128xf32>
    %cst_59 = arith.constant 1.000000e+00 : f32
    %261 = vector.broadcast %cst_59 : f32 to vector<1x128xf32>
    %262 = arith.addf %261, %260 : vector<1x128xf32>
    %263 = arith.divf %261, %262 : vector<1x128xf32>
    %264 = vector.extract_strided_slice %252 {offsets = [0, 128], sizes = [1, 128], strides = [1, 1]} : vector<1x384xf32> to vector<1x128xf32>
    %265 = vector.extract_strided_slice %255 {offsets = [0, 128], sizes = [1, 128], strides = [1, 1]} : vector<1x384xf32> to vector<1x128xf32>
    %266 = arith.addf %264, %265 : vector<1x128xf32>
    %267 = arith.negf %266 : vector<1x128xf32>
    %268 = math.exp %267 : vector<1x128xf32>
    %cst_60 = arith.constant 1.000000e+00 : f32
    %269 = vector.broadcast %cst_60 : f32 to vector<1x128xf32>
    %270 = arith.addf %269, %268 : vector<1x128xf32>
    %271 = arith.divf %269, %270 : vector<1x128xf32>
    %272 = vector.extract_strided_slice %252 {offsets = [0, 256], sizes = [1, 128], strides = [1, 1]} : vector<1x384xf32> to vector<1x128xf32>
    %273 = vector.extract_strided_slice %255 {offsets = [0, 256], sizes = [1, 128], strides = [1, 1]} : vector<1x384xf32> to vector<1x128xf32>
    %274 = arith.mulf %263, %273 : vector<1x128xf32>
    %275 = arith.addf %272, %274 : vector<1x128xf32>
    %276 = math.tanh %275 : vector<1x128xf32>
    %cst_61 = arith.constant 1.000000e+00 : f32
    %277 = vector.broadcast %cst_61 : f32 to vector<1x128xf32>
    %278 = arith.subf %277, %271 : vector<1x128xf32>
    %279 = arith.mulf %278, %276 : vector<1x128xf32>
    %280 = arith.mulf %271, %247 : vector<1x128xf32>
    %281 = arith.addf %279, %280 : vector<1x128xf32>
    %282 = arith.truncf %281 : vector<1x128xf32> to vector<1x128xbf16>
    %283 = arith.index_cast %c7_i32 : i32 to index
    %c0_62 = arith.constant 0 : index
    %284 = vector.load %arg7[%283, %c0_62] : memref<8x128xbf16, #tpu.memory_space<vmem>>, vector<1x128xbf16>
    tpu.vector_store %arg7[%283, %c0_62], %282 {strides = array<i32>} : memref<8x128xbf16, #tpu.memory_space<vmem>>, vector<1x128xbf16>,
    %c8_i32 = arith.constant 8 : i32
    %c0_63 = arith.constant 0 : index
    %c0_64 = arith.constant 0 : index
    %285 = vector.load %arg8[%c0_63, %c0_64] : memref<1x128xf32, #tpu.memory_space<vmem>>, vector<1x128xf32>
    tpu.vector_store %arg8[%c0_63, %c0_64], %281 {strides = array<i32>} : memref<1x128xf32, #tpu.memory_space<vmem>>, vector<1x128xf32>,
    return
  }
  func.func @transform_0(%arg0: i32) -> (i32, i32) {
    %c0_i32 = arith.constant 0 : i32
    %c0_i32_0 = arith.constant 0 : i32
    return %arg0, %c0_i32 : i32, i32
  }
  func.func @transform_1(%arg0: i32) -> (i32, i32) {
    %c0_i32 = arith.constant 0 : i32
    %c0_i32_0 = arith.constant 0 : i32
    %c0_i32_1 = arith.constant 0 : i32
    return %c0_i32, %c0_i32_0 : i32, i32
  }
  func.func @transform_2(%arg0: i32) -> (i32, i32) {
    %c0_i32 = arith.constant 0 : i32
    %c0_i32_0 = arith.constant 0 : i32
    %c0_i32_1 = arith.constant 0 : i32
    return %c0_i32, %c0_i32_0 : i32, i32
  }
  func.func @transform_3(%arg0: i32) -> (i32, i32) {
    %c0_i32 = arith.constant 0 : i32
    %c0_i32_0 = arith.constant 0 : i32
    %c0_i32_1 = arith.constant 0 : i32
    return %c0_i32, %c0_i32_0 : i32, i32
  }
  func.func @transform_4(%arg0: i32) -> (i32, i32) {
    %c0_i32 = arith.constant 0 : i32
    %c0_i32_0 = arith.constant 0 : i32
    %c0_i32_1 = arith.constant 0 : i32
    return %c0_i32, %c0_i32_0 : i32, i32
  }
  func.func @transform_5(%arg0: i32) -> (i32, i32) {
    %c0_i32 = arith.constant 0 : i32
    %c0_i32_0 = arith.constant 0 : i32
    %c0_i32_1 = arith.constant 0 : i32
    return %c0_i32, %c0_i32_0 : i32, i32
  }
  func.func @transform_6(%arg0: i32) -> (i32, i32) {
    %c0_i32 = arith.constant 0 : i32
    %c0_i32_0 = arith.constant 0 : i32
    return %arg0, %c0_i32 : i32, i32
  }
}

</mosaic_0001>

<llo_original>
// kernel: tpu_custom_call.1
$region0: #{tpu_custom_call.1}
  #allocation0 [shape = 'u32[]', space=smem, size = 0x4, offset = 0x4, fixed_abs, tag = 'smem constant byte address 0x4 - core index']
  #allocation1 [shape = 'u32[72,128]{1,0:T(1,128)}', space=vmem, size = 0x9000, scoped, tag = 'internal scratch']
  #allocation2 [shape = 'f32[1,128]{1,0:T(1,128)}', space=vmem, size = 0x200, scoped, tag = 'scratch operand']
  #allocation3 [shape = 'f32[8,384]{1,0:T(8,128)}', space=vmem, size = 0x3000, scoped, tag = 'scratch operand']
  %s0 = inlined_call_operand.hbm [shape: bf16[8,128], index: 0, kind: input, shape index: {}]
  %s1 = inlined_call_operand.hbm [shape: bf16[128,384], index: 1, kind: input, shape index: {}]
  %s2 = inlined_call_operand.hbm [shape: bf16[128,384], index: 2, kind: input, shape index: {}]
  %s3 = inlined_call_operand.hbm [shape: f32[1,384], index: 3, kind: input, shape index: {}]
  %s4 = inlined_call_operand.vmem [shape: f32[1,384], index: 4, kind: input, shape index: {}]
  %s5 = inlined_call_operand.vmem [shape: f32[1,128], index: 5, kind: input, shape index: {}]
  %s6 = inlined_call_operand.hbm [shape: bf16[8,128], index: 6, kind: output, shape index: {}]
  %s7 = sld [smem:[#allocation0]]
  $region54: #{tpu_custom_call.1} parent=0
    _
  %s9 = ssub.s32 1, %s7
  %s10 = scalar_select 0, %s9, %s7
  $region1: #{tpu_custom_call.1} parent=0
    #allocation4 [shape = 'u8[2048]{0}', space=vmem, size = 0x800, scoped, tag = 'input window, operand 0, single buffered']
    #allocation5 [shape = 's32[1]{0}', space=sflag, size = 0x4, scoped, tag = 'scoped memory for tpu_custom_call.1']
    #allocation6 [shape = 's32[1]{0}', space=sflag, size = 0x4, scoped, tag = 'scoped memory for tpu_custom_call.1']
    #allocation7 [shape = 'u8[98304]{0}', space=vmem, size = 0x18000, scoped, tag = 'input window, operand 1, single buffered']
    #allocation8 [shape = 's32[1]{0}', space=sflag, size = 0x4, scoped, tag = 'scoped memory for tpu_custom_call.1']
    #allocation9 [shape = 'u8[98304]{0}', space=vmem, size = 0x18000, scoped, tag = 'input window, operand 2, single buffered']
    #allocation10 [shape = 'u8[1536]{0}', space=vmem, size = 0x800, scoped, tag = 'input window, operand 3, single buffered']
    #allocation11 [shape = 's32[1]{0}', space=sflag, size = 0x4, scoped, tag = 'scoped memory for tpu_custom_call.1']
    #allocation12 [shape = 'u8[2048]{0}', space=vmem, size = 0x800, scoped, tag = 'output window, operand 0, single buffered']
    %11 = vsyncpa [#allocation5], 0
    %12 = vsyncpa [#allocation8], 0
    %13 = vsyncpa [#allocation11], 0
    %14 = vsyncpa [#allocation6], 0
    // Predicated region
    $region2: #{tpu_custom_call.1} parent=1 // pred_check
      _
    $region3: #{tpu_custom_call.1} parent=1 // pred_check_branch
      %16 = sbr.rel (0) target = $region5
    $region4: #{tpu_custom_call.1} parent=1 // pred_region
      %18 = vsyncadd [#allocation5], 0
      %s20 = sshll.u32 %s0, 4
      %s21 = int_to_ptr.hbm [resolvable:$true] %s20
      %s22 = sshll.u32 [#allocation4], 4
      %s23 = int_to_ptr.vmem [resolvable:$true] %s22
      %25 = dma.hbm_to_vmem [thread:$0]  %s21, 64, %s23, [#allocation5]
    $region5: #{tpu_custom_call.1} parent=1 // pred_fallthru
      _
    // Predicated region
    $region6: #{tpu_custom_call.1} parent=1 // pred_check
      _
    $region7: #{tpu_custom_call.1} parent=1 // pred_check_branch
      %27 = sbr.rel (0) target = $region9
    $region8: #{tpu_custom_call.1} parent=1 // pred_region
      %29 = vsyncadd [#allocation8], 0
      %s30 = sshll.u32 %s1, 4
      %s31 = int_to_ptr.hbm [resolvable:$true] %s30
      %s32 = sshll.u32 [#allocation7], 4
      %s33 = int_to_ptr.vmem [resolvable:$true] %s32
      %38 = dma.hbm_to_vmem [thread:$0]  %s31, 3072, %s33, [#allocation8], 192, 192, 12
    $region9: #{tpu_custom_call.1} parent=1 // pred_fallthru
      _
    // Predicated region
    $region10: #{tpu_custom_call.1} parent=1 // pred_check
      _
    $region11: #{tpu_custom_call.1} parent=1 // pred_check_branch
      %40 = sbr.rel (0) target = $region13
    $region12: #{tpu_custom_call.1} parent=1 // pred_region
      %42 = vsyncadd [#allocation8], 0
      %s43 = sshll.u32 %s2, 4
      %s44 = int_to_ptr.hbm [resolvable:$true] %s43
      %s45 = sshll.u32 [#allocation9], 4
      %s46 = int_to_ptr.vmem [resolvable:$true] %s45
      %51 = dma.hbm_to_vmem [thread:$0]  %s44, 3072, %s46, [#allocation8], 192, 192, 12
    $region13: #{tpu_custom_call.1} parent=1 // pred_fallthru
      _
    // Predicated region
    $region14: #{tpu_custom_call.1} parent=1 // pred_check
      _
    $region15: #{tpu_custom_call.1} parent=1 // pred_check_branch
      %53 = sbr.rel (0) target = $region17
    $region16: #{tpu_custom_call.1} parent=1 // pred_region
      %55 = vsyncadd [#allocation11], 0
      %s57 = sshll.u32 %s3, 4
      %s58 = int_to_ptr.hbm [resolvable:$true] %s57
      %s59 = sshll.u32 [#allocation10], 4
      %s60 = int_to_ptr.vmem [resolvable:$true] %s59
      %62 = dma.hbm_to_vmem [thread:$0]  %s58, 48, %s60, [#allocation11]
    $region17: #{tpu_custom_call.1} parent=1 // pred_fallthru
      _
    // Predicated region
    $region18: #{tpu_custom_call.1} parent=1 // pred_check
      _
    $region19: #{tpu_custom_call.1} parent=1 // pred_check_branch
      %64 = sbr.rel (0) target = $region21
    $region20: #{tpu_custom_call.1} parent=1 // pred_region
      _
    $region21: #{tpu_custom_call.1} parent=1 // pred_fallthru
      _
    // Predicated region
    $region22: #{tpu_custom_call.1} parent=1 // pred_check
      _
    $region23: #{tpu_custom_call.1} parent=1 // pred_check_branch
      %66 = sbr.rel (0) target = $region25
    $region24: #{tpu_custom_call.1} parent=1 // pred_region
      _
    $region25: #{tpu_custom_call.1} parent=1 // pred_fallthru
      _
    // Predicated region
    $region26: #{tpu_custom_call.1} parent=1 // pred_check
      _
    $region27: #{tpu_custom_call.1} parent=1 // pred_check_branch
      %68 = sbr.rel (0) target = $region29
    $region28: #{tpu_custom_call.1} parent=1 // pred_region
      %70 = dma.done [#allocation5], 64
    $region29: #{tpu_custom_call.1} parent=1 // pred_fallthru
      _
    // Predicated region
    $region30: #{tpu_custom_call.1} parent=1 // pred_check
      _
    $region31: #{tpu_custom_call.1} parent=1 // pred_check_branch
      %72 = sbr.rel (0) target = $region33
    $region32: #{tpu_custom_call.1} parent=1 // pred_region
      %74 = dma.done [#allocation8], 3072
    $region33: #{tpu_custom_call.1} parent=1 // pred_fallthru
      _
    // Predicated region
    $region34: #{tpu_custom_call.1} parent=1 // pred_check
      _
    $region35: #{tpu_custom_call.1} parent=1 // pred_check_branch
      %76 = sbr.rel (0) target = $region37
    $region36: #{tpu_custom_call.1} parent=1 // pred_region
      %78 = dma.done [#allocation8], 3072
    $region37: #{tpu_custom_call.1} parent=1 // pred_fallthru
      _
    // Predicated region
    $region38: #{tpu_custom_call.1} parent=1 // pred_check
      _
    $region39: #{tpu_custom_call.1} parent=1 // pred_check_branch
      %80 = sbr.rel (0) target = $region41
    $region40: #{tpu_custom_call.1} parent=1 // pred_region
      %82 = dma.done [#allocation11], 48
    $region41: #{tpu_custom_call.1} parent=1 // pred_fallthru
      _
    %p83 = scmp.eq.s32.totalorder 0, 0
    // Predicated region
    $region42: #{tpu_custom_call.1} parent=1 // pred_check
      %p84 = pneg %p83
    $region43: #{tpu_custom_call.1} parent=1 // pred_check_branch
      %86 = sbr.rel (%p84) target = $region45
    $region44: #{tpu_custom_call.1} parent=1 // pred_region
      %v87 = vld [vmem:[%s5] sm:$0x1]
      %88 = vst [vmem:[#allocation2] sm:$0x1] %v87
    $region45: #{tpu_custom_call.1} parent=1 // pred_fallthru
      _
    %v89 = vld [vmem:[#allocation4] sm:$0xf]
    %v90 = vld [vmem:[#allocation7] sm:$0xff]
    %v91 = vld [vmem:[#allocation7 + $0x8] sm:$0xf]
    %v92 = vld [vmem:[#allocation7 + $0xc] sm:$0xff]
    %v93 = vld [vmem:[#allocation7 + $0x14] sm:$0xf]
    %v94 = vld [vmem:[#allocation7 + $0x18] sm:$0xff]
    %v95 = vld [vmem:[#allocation7 + $0x20] sm:$0xf]
    %v96 = vld [vmem:[#allocation7 + $0x24] sm:$0xff]
    %v97 = vld [vmem:[#allocation7 + $0x2c] sm:$0xf]
    %v98 = vld [vmem:[#allocation7 + $0x30] sm:$0xff]
    %v99 = vld [vmem:[#allocation7 + $0x38] sm:$0xf]
    %v100 = vld [vmem:[#allocation7 + $0x3c] sm:$0xff]
    %v101 = vld [vmem:[#allocation7 + $0x44] sm:$0xf]
    %v102 = vld [vmem:[#allocation7 + $0x48] sm:$0xff]
    %v103 = vld [vmem:[#allocation7 + $0x50] sm:$0xf]
    %v104 = vld [vmem:[#allocation7 + $0x54] sm:$0xff]
    %v105 = vld [vmem:[#allocation7 + $0x5c] sm:$0xf]
    %v106 = vld [vmem:[#allocation7 + $0x60] sm:$0xff]
    %v107 = vld [vmem:[#allocation7 + $0x68] sm:$0xf]
    %v108 = vld [vmem:[#allocation7 + $0x6c] sm:$0xff]
    %v109 = vld [vmem:[#allocation7 + $0x74] sm:$0xf]
    %v110 = vld [vmem:[#allocation7 + $0x78] sm:$0xff]
    %v111 = vld [vmem:[#allocation7 + $0x80] sm:$0xf]
    %v112 = vld [vmem:[#allocation7 + $0x84] sm:$0xff]
    %v113 = vld [vmem:[#allocation7 + $0x8c] sm:$0xf]
    %v114 = vld [vmem:[#allocation7 + $0x90] sm:$0xff]
    %v115 = vld [vmem:[#allocation7 + $0x98] sm:$0xf]
    %v116 = vld [vmem:[#allocation7 + $0x9c] sm:$0xff]
    %v117 = vld [vmem:[#allocation7 + $0xa4] sm:$0xf]
    %v118 = vld [vmem:[#allocation7 + $0xa8] sm:$0xff]
    %v119 = vld [vmem:[#allocation7 + $0xb0] sm:$0xf]
    %v120 = vld [vmem:[#allocation7 + $0xb4] sm:$0xff]
    %v121 = vld [vmem:[#allocation7 + $0xbc] sm:$0xf]
    %v122 = vld [vmem:[#allocation10] sm:$0x7]
    %v124 = vperm.slane %v122, 0
    %v125 = vperm.slane %v122, 1
    %v126 = vperm.slane %v122, 2
    %v162 = vunpack.c.l.b16 %v90
    %v163 = vunpack.c.h.b16 %v90
    %v164 = vunpack.c.l.b16 %v91
    %v165 = vunpack.c.l.b16 %v92
    %v166 = vunpack.c.h.b16 %v92
    %v167 = vunpack.c.l.b16 %v93
    %v168 = vunpack.c.l.b16 %v94
    %v169 = vunpack.c.h.b16 %v94
    %v170 = vunpack.c.l.b16 %v95
    %v171 = vunpack.c.l.b16 %v96
    %v172 = vunpack.c.h.b16 %v96
    %v173 = vunpack.c.l.b16 %v97
    %v174 = vunpack.c.l.b16 %v98
    %v175 = vunpack.c.h.b16 %v98
    %v176 = vunpack.c.l.b16 %v99
    %v177 = vunpack.c.l.b16 %v100
    %v178 = vunpack.c.h.b16 %v100
    %v179 = vunpack.c.l.b16 %v101
    %v180 = vunpack.c.l.b16 %v102
    %v181 = vunpack.c.h.b16 %v102
    %v182 = vunpack.c.l.b16 %v103
    %v183 = vunpack.c.l.b16 %v104
    %v184 = vunpack.c.h.b16 %v104
    %v185 = vunpack.c.l.b16 %v105
    %v186 = vunpack.c.l.b16 %v106
    %v187 = vunpack.c.h.b16 %v106
    %v188 = vunpack.c.l.b16 %v107
    %v189 = vunpack.c.l.b16 %v108
    %v190 = vunpack.c.h.b16 %v108
    %v191 = vunpack.c.l.b16 %v109
    %v192 = vunpack.c.l.b16 %v110
    %v193 = vunpack.c.h.b16 %v110
    %v194 = vunpack.c.l.b16 %v111
    %v195 = vunpack.c.l.b16 %v112
    %v196 = vunpack.c.h.b16 %v112
    %v197 = vunpack.c.l.b16 %v113
    %v198 = vunpack.c.l.b16 %v114
    %v199 = vunpack.c.h.b16 %v114
    %v200 = vunpack.c.l.b16 %v115
    %v201 = vunpack.c.l.b16 %v116
    %v202 = vunpack.c.h.b16 %v116
    %v203 = vunpack.c.l.b16 %v117
    %v204 = vunpack.c.l.b16 %v118
    %v205 = vunpack.c.h.b16 %v118
    %v206 = vunpack.c.l.b16 %v119
    %v207 = vunpack.c.l.b16 %v120
    %v208 = vunpack.c.h.b16 %v120
    %v209 = vunpack.c.l.b16 %v121
    %v210 = vpack.c.b16 %v165, %v162
    %v211 = vpack.c.b16 %v166, %v163
    %v212 = vpack.c.b16 %v167, %v164
    %v213 = vpack.c.b16 %v171, %v168
    %v214 = vpack.c.b16 %v172, %v169
    %v215 = vpack.c.b16 %v173, %v170
    %v216 = vpack.c.b16 %v177, %v174
    %v217 = vpack.c.b16 %v178, %v175
    %v218 = vpack.c.b16 %v179, %v176
    %v219 = vpack.c.b16 %v183, %v180
    %v220 = vpack.c.b16 %v184, %v181
    %v221 = vpack.c.b16 %v185, %v182
    %v222 = vpack.c.b16 %v189, %v186
    %v223 = vpack.c.b16 %v190, %v187
    %v224 = vpack.c.b16 %v191, %v188
    %v225 = vpack.c.b16 %v195, %v192
    %v226 = vpack.c.b16 %v196, %v193
    %v227 = vpack.c.b16 %v197, %v194
    %v228 = vpack.c.b16 %v201, %v198
    %v229 = vpack.c.b16 %v202, %v199
    %v230 = vpack.c.b16 %v203, %v200
    %v231 = vpack.c.b16 %v207, %v204
    %v232 = vpack.c.b16 %v208, %v205
    %v233 = vpack.c.b16 %v209, %v206
    %258 = vmatpush.bf16.msra.mxu0 %v231
    %259 = vmatpush.bf16.msra.mxu0 %v228
    %260 = vmatpush.bf16.msra.mxu0 %v225
    %261 = vmatpush.bf16.msra.mxu0 %v222
    %262 = vmatpush.bf16.msra.mxu0 %v219
    %263 = vmatpush.bf16.msra.mxu0 %v216
    %264 = vmatpush.bf16.msra.mxu0 %v213
    %265 = vmatpush.bf16.msra.mxu0 %v210
    %266 = vmatmul.bf16.gmra.mxu0 %v89
    %v267 = vpop.f32.mrf.mxu0
    %v268 = vadd.f32 %v124, %v267
    %v269 = vpop.f32.mrf.mxu0
    %270 = vdwg.mxu0
    %271 = vmatpush.bf16.msra.mxu0 %v232
    %272 = vmatpush.bf16.msra.mxu0 %v229
    %273 = vmatpush.bf16.msra.mxu0 %v226
    %274 = vmatpush.bf16.msra.mxu0 %v223
    %275 = vmatpush.bf16.msra.mxu0 %v220
    %276 = vmatpush.bf16.msra.mxu0 %v217
    %277 = vmatpush.bf16.msra.mxu0 %v214
    %278 = vmatpush.bf16.msra.mxu0 %v211
    %279 = vmatmul.bf16.gmra.mxu0 %v89
    %v280 = vpop.f32.mrf.mxu0
    %v281 = vadd.f32 %v125, %v280
    %v282 = vpop.f32.mrf.mxu0
    %283 = vdwg.mxu0
    %284 = vmatpush.bf16.msra.mxu0 %v233
    %285 = vmatpush.bf16.msra.mxu0 %v230
    %286 = vmatpush.bf16.msra.mxu0 %v227
    %287 = vmatpush.bf16.msra.mxu0 %v224
    %288 = vmatpush.bf16.msra.mxu0 %v221
    %289 = vmatpush.bf16.msra.mxu0 %v218
    %290 = vmatpush.bf16.msra.mxu0 %v215
    %291 = vmatpush.bf16.msra.mxu0 %v212
    %292 = vmatmul.bf16.gmra.mxu0 %v89
    %v293 = vpop.f32.mrf.mxu0
    %v294 = vadd.f32 %v126, %v293
    %v295 = vpop.f32.mrf.mxu0
    %296 = vdwg.mxu0
    %297 = vst [vmem:[#allocation3] sm:$0xff] %v268
    %298 = vst [vmem:[#allocation3 + $0x8] sm:$0xff] %v281
    %299 = vst [vmem:[#allocation3 + $0x10] sm:$0xff] %v294
    %v300 = vld [vmem:[#allocation9] sm:$0xff]
    %v301 = vld [vmem:[#allocation9 + $0x8] sm:$0xf]
    %v302 = vld [vmem:[#allocation9 + $0xc] sm:$0xff]
    %v303 = vld [vmem:[#allocation9 + $0x14] sm:$0xf]
    %v304 = vld [vmem:[#allocation9 + $0x18] sm:$0xff]
    %v305 = vld [vmem:[#allocation9 + $0x20] sm:$0xf]
    %v306 = vld [vmem:[#allocation9 + $0x24] sm:$0xff]
    %v307 = vld [vmem:[#allocation9 + $0x2c] sm:$0xf]
    %v308 = vld [vmem:[#allocation9 + $0x30] sm:$0xff]
    %v309 = vld [vmem:[#allocation9 + $0x38] sm:$0xf]
    %v310 = vld [vmem:[#allocation9 + $0x3c] sm:$0xff]
    %v311 = vld [vmem:[#allocation9 + $0x44] sm:$0xf]
    %v312 = vld [vmem:[#allocation9 + $0x48] sm:$0xff]
    %v313 = vld [vmem:[#allocation9 + $0x50] sm:$0xf]
    %v314 = vld [vmem:[#allocation9 + $0x54] sm:$0xff]
    %v315 = vld [vmem:[#allocation9 + $0x5c] sm:$0xf]
    %v316 = vld [vmem:[#allocation9 + $0x60] sm:$0xff]
    %v317 = vld [vmem:[#allocation9 + $0x68] sm:$0xf]
    %v318 = vld [vmem:[#allocation9 + $0x6c] sm:$0xff]
    %v319 = vld [vmem:[#allocation9 + $0x74] sm:$0xf]
    %v320 = vld [vmem:[#allocation9 + $0x78] sm:$0xff]
    %v321 = vld [vmem:[#allocation9 + $0x80] sm:$0xf]
    %v322 = vld [vmem:[#allocation9 + $0x84] sm:$0xff]
    %v323 = vld [vmem:[#allocation9 + $0x8c] sm:$0xf]
    %v324 = vld [vmem:[#allocation9 + $0x90] sm:$0xff]
    %v325 = vld [vmem:[#allocation9 + $0x98] sm:$0xf]
    %v326 = vld [vmem:[#allocation9 + $0x9c] sm:$0xff]
    %v327 = vld [vmem:[#allocation9 + $0xa4] sm:$0xf]
    %v328 = vld [vmem:[#allocation9 + $0xa8] sm:$0xff]
    %v329 = vld [vmem:[#allocation9 + $0xb0] sm:$0xf]
    %v330 = vld [vmem:[#allocation9 + $0xb4] sm:$0xff]
    %v331 = vld [vmem:[#allocation9 + $0xbc] sm:$0xf]
    %v332 = vld [vmem:[%s4] sm:$0x7]
    %v333 = vld [vmem:[#allocation2] sm:$0x1]
    %v334 = vld [vmem:[#allocation3] ss:$8 sm:$0x7]
    %v335 = vpack.c.bf16 %v333, %v333
    %v368 = vunpack.c.l.b16 %v300
    %v369 = vunpack.c.h.b16 %v300
    %v370 = vunpack.c.l.b16 %v301
    %v371 = vunpack.c.l.b16 %v302
    %v372 = vunpack.c.h.b16 %v302
    %v373 = vunpack.c.l.b16 %v303
    %v374 = vunpack.c.l.b16 %v304
    %v375 = vunpack.c.h.b16 %v304
    %v376 = vunpack.c.l.b16 %v305
    %v377 = vunpack.c.l.b16 %v306
    %v378 = vunpack.c.h.b16 %v306
    %v379 = vunpack.c.l.b16 %v307
    %v380 = vunpack.c.l.b16 %v308
    %v381 = vunpack.c.h.b16 %v308
    %v382 = vunpack.c.l.b16 %v309
    %v383 = vunpack.c.l.b16 %v310
    %v384 = vunpack.c.h.b16 %v310
    %v385 = vunpack.c.l.b16 %v311
    %v386 = vunpack.c.l.b16 %v312
    %v387 = vunpack.c.h.b16 %v312
    %v388 = vunpack.c.l.b16 %v313
    %v389 = vunpack.c.l.b16 %v314
    %v390 = vunpack.c.h.b16 %v314
    %v391 = vunpack.c.l.b16 %v315
    %v392 = vunpack.c.l.b16 %v316
    %v393 = vunpack.c.h.b16 %v316
    %v394 = vunpack.c.l.b16 %v317
    %v395 = vunpack.c.l.b16 %v318
    %v396 = vunpack.c.h.b16 %v318
    %v397 = vunpack.c.l.b16 %v319
    %v398 = vunpack.c.l.b16 %v320
    %v399 = vunpack.c.h.b16 %v320
    %v400 = vunpack.c.l.b16 %v321
    %v401 = vunpack.c.l.b16 %v322
    %v402 = vunpack.c.h.b16 %v322
    %v403 = vunpack.c.l.b16 %v323
    %v404 = vunpack.c.l.b16 %v324
    %v405 = vunpack.c.h.b16 %v324
    %v406 = vunpack.c.l.b16 %v325
    %v407 = vunpack.c.l.b16 %v326
    %v408 = vunpack.c.h.b16 %v326
    %v409 = vunpack.c.l.b16 %v327
    %v410 = vunpack.c.l.b16 %v328
    %v411 = vunpack.c.h.b16 %v328
    %v412 = vunpack.c.l.b16 %v329
    %v413 = vunpack.c.l.b16 %v330
    %v414 = vunpack.c.h.b16 %v330
    %v415 = vunpack.c.l.b16 %v331
    %v416 = vpack.c.b16 %v371, %v368
    %v417 = vpack.c.b16 %v372, %v369
    %v418 = vpack.c.b16 %v373, %v370
    %v419 = vpack.c.b16 %v377, %v374
    %v420 = vpack.c.b16 %v378, %v375
    %v421 = vpack.c.b16 %v379, %v376
    %v422 = vpack.c.b16 %v383, %v380
    %v423 = vpack.c.b16 %v384, %v381
    %v424 = vpack.c.b16 %v385, %v382
    %v425 = vpack.c.b16 %v389, %v386
    %v426 = vpack.c.b16 %v390, %v387
    %v427 = vpack.c.b16 %v391, %v388
    %v428 = vpack.c.b16 %v395, %v392
    %v429 = vpack.c.b16 %v396, %v393
    %v430 = vpack.c.b16 %v397, %v394
    %v431 = vpack.c.b16 %v401, %v398
    %v432 = vpack.c.b16 %v402, %v399
    %v433 = vpack.c.b16 %v403, %v400
    %v434 = vpack.c.b16 %v407, %v404
    %v435 = vpack.c.b16 %v408, %v405
    %v436 = vpack.c.b16 %v409, %v406
    %v437 = vpack.c.b16 %v413, %v410
    %v438 = vpack.c.b16 %v414, %v411
    %v439 = vpack.c.b16 %v415, %v412
    %v465 = vperm.slane %v332, 0
    %v466 = vperm.slane %v332, 1
    %v467 = vperm.slane %v332, 2
    %471 = vmatpush.bf16.msra.mxu0 %v437
    %472 = vmatpush.bf16.msra.mxu0 %v434
    %473 = vmatpush.bf16.msra.mxu0 %v431
    %474 = vmatpush.bf16.msra.mxu0 %v428
    %475 = vmatpush.bf16.msra.mxu0 %v425
    %476 = vmatpush.bf16.msra.mxu0 %v422
    %477 = vmatpush.bf16.msra.mxu0 %v419
    %478 = vmatpush.bf16.msra.mxu0 %v416
    %479 = vmatmul.bf16.gmra.mxu0 %v335
    %v480 = vpop.f32.mrf.mxu0
    %v481 = vadd.f32 %v465, %v480
    %v482 = vpop.f32.mrf.mxu0
    %483 = vdwg.mxu0
    %484 = vmatpush.bf16.msra.mxu0 %v438
    %485 = vmatpush.bf16.msra.mxu0 %v435
    %486 = vmatpush.bf16.msra.mxu0 %v432
    %487 = vmatpush.bf16.msra.mxu0 %v429
    %488 = vmatpush.bf16.msra.mxu0 %v426
    %489 = vmatpush.bf16.msra.mxu0 %v423
    %490 = vmatpush.bf16.msra.mxu0 %v420
    %491 = vmatpush.bf16.msra.mxu0 %v417
    %492 = vmatmul.bf16.gmra.mxu0 %v335
    %v493 = vpop.f32.mrf.mxu0
    %v494 = vadd.f32 %v466, %v493
    %v495 = vpop.f32.mrf.mxu0
    %496 = vdwg.mxu0
    %497 = vmatpush.bf16.msra.mxu0 %v439
    %498 = vmatpush.bf16.msra.mxu0 %v436
    %499 = vmatpush.bf16.msra.mxu0 %v433
    %500 = vmatpush.bf16.msra.mxu0 %v430
    %501 = vmatpush.bf16.msra.mxu0 %v427
    %502 = vmatpush.bf16.msra.mxu0 %v424
    %503 = vmatpush.bf16.msra.mxu0 %v421
    %504 = vmatpush.bf16.msra.mxu0 %v418
    %505 = vmatmul.bf16.gmra.mxu0 %v335
    %v506 = vpop.f32.mrf.mxu0
    %v507 = vadd.f32 %v467, %v506
    %v508 = vpop.f32.mrf.mxu0
    %509 = vdwg.mxu0
    %v510 = vadd.f32 %v334, %v481
    %v511 = vxor.u32 %v510, 2147483648
    %v512 = vmul.f32 %v511, 1.442695
    %v513 = vpow.pop %v512
    %v514 = vadd.f32 %v513, 1.0
    %v515 = vrcp.pop %v514
    %v516 = vmul.f32 %v514, %v515
    %v517 = vsub.f32 1.0, %v516
    %v518 = vmul.f32 %v515, %v517
    %v519 = vadd.f32 %v515, %v518
    %vm520 = vweird.f32 %v514
    %vm521 = vweird.f32 %v515
    %vm522 = vmor %vm520, %vm521
    %v523 = vsel %vm522, %v515, %v519
    %v524 = vand.u32 2147483647, %v514
    %vm525 = vcmp.eq.f32.partialorder %v524, 8.507059e+37
    %v526 = vand.u32 %v514, 2147483648
    %v527 = vor.u32 1.1754944e-38, %v526
    %v528 = vsel %vm525, %v527, %v523
    %v529 = vmul.f32 1.0, %v528
    %v531 = vrot.slane %v334, 1
    %v533 = vadd.f32 %v531, %v494
    %v534 = vxor.u32 %v533, 2147483648
    %v535 = vmul.f32 %v534, 1.442695
    %v536 = vpow.pop %v535
    %v537 = vadd.f32 %v536, 1.0
    %v538 = vrcp.pop %v537
    %v539 = vmul.f32 %v537, %v538
    %v540 = vsub.f32 1.0, %v539
    %v541 = vmul.f32 %v538, %v540
    %v542 = vadd.f32 %v538, %v541
    %vm543 = vweird.f32 %v537
    %vm544 = vweird.f32 %v538
    %vm545 = vmor %vm543, %vm544
    %v546 = vsel %vm545, %v538, %v542
    %v547 = vand.u32 2147483647, %v537
    %vm548 = vcmp.eq.f32.partialorder %v547, 8.507059e+37
    %v549 = vand.u32 %v537, 2147483648
    %v550 = vor.u32 1.1754944e-38, %v549
    %v551 = vsel %vm548, %v550, %v546
    %v552 = vmul.f32 1.0, %v551
    %v553 = vmul.f32 %v529, %v507
    %v554 = vrot.slane %v334, 2
    %v556 = vadd.f32 %v554, %v553
    %v557 = vtanh.pop %v556
    %v558 = vsub.f32 1.0, %v552
    %v559 = vmul.f32 %v558, %v557
    %v560 = vmul.f32 %v552, %v333
    %v561 = vadd.f32 %v559, %v560
    %v562 = vpack.c.bf16 %v561, %v561
    %vm563 = vcmask 1040384
    %vm564 = vsmask.f32 256
    %vm565 = vmand %vm563, %vm564
    %v566 = vld [vmem:[#allocation12] sm:$0x1]
    %v567 = vsel %vm565, %v562, %v566
    %568 = vst [vmem:[#allocation12] sm:$0x1] %v567
    %s569 = scalar_lea.vmem [#allocation3], 1
    %v570 = vld [vmem:[%s569] ss:$8 sm:$0x7]
    %571 = vmatpush.bf16.msra.mxu0 %v437
    %572 = vmatpush.bf16.msra.mxu0 %v434
    %573 = vmatpush.bf16.msra.mxu0 %v431
    %574 = vmatpush.bf16.msra.mxu0 %v428
    %575 = vmatpush.bf16.msra.mxu0 %v425
    %576 = vmatpush.bf16.msra.mxu0 %v422
    %577 = vmatpush.bf16.msra.mxu0 %v419
    %578 = vmatpush.bf16.msra.mxu0 %v416
    %579 = vmatmul.bf16.gmra.mxu0 %v562
    %v580 = vpop.f32.mrf.mxu0
    %v581 = vadd.f32 %v465, %v580
    %v582 = vpop.f32.mrf.mxu0
    %583 = vdwg.mxu0
    %584 = vmatpush.bf16.msra.mxu0 %v438
    %585 = vmatpush.bf16.msra.mxu0 %v435
    %586 = vmatpush.bf16.msra.mxu0 %v432
    %587 = vmatpush.bf16.msra.mxu0 %v429
    %588 = vmatpush.bf16.msra.mxu0 %v426
    %589 = vmatpush.bf16.msra.mxu0 %v423
    %590 = vmatpush.bf16.msra.mxu0 %v420
    %591 = vmatpush.bf16.msra.mxu0 %v417
    %592 = vmatmul.bf16.gmra.mxu0 %v562
    %v593 = vpop.f32.mrf.mxu0
    %v594 = vadd.f32 %v466, %v593
    %v595 = vpop.f32.mrf.mxu0
    %596 = vdwg.mxu0
    %597 = vmatpush.bf16.msra.mxu0 %v439
    %598 = vmatpush.bf16.msra.mxu0 %v436
    %599 = vmatpush.bf16.msra.mxu0 %v433
    %600 = vmatpush.bf16.msra.mxu0 %v430
    %601 = vmatpush.bf16.msra.mxu0 %v427
    %602 = vmatpush.bf16.msra.mxu0 %v424
    %603 = vmatpush.bf16.msra.mxu0 %v421
    %604 = vmatpush.bf16.msra.mxu0 %v418
    %605 = vmatmul.bf16.gmra.mxu0 %v562
    %v606 = vpop.f32.mrf.mxu0
    %v607 = vadd.f32 %v467, %v606
    %v608 = vpop.f32.mrf.mxu0
    %609 = vdwg.mxu0
    %v610 = vadd.f32 %v570, %v581
    %v611 = vxor.u32 %v610, 2147483648
    %v612 = vmul.f32 %v611, 1.442695
    %v613 = vpow.pop %v612
    %v614 = vadd.f32 %v613, 1.0
    %v615 = vrcp.pop %v614
    %v616 = vmul.f32 %v614, %v615
    %v617 = vsub.f32 1.0, %v616
    %v618 = vmul.f32 %v615, %v617
    %v619 = vadd.f32 %v615, %v618
    %vm620 = vweird.f32 %v614
    %vm621 = vweird.f32 %v615
    %vm622 = vmor %vm620, %vm621
    %v623 = vsel %vm622, %v615, %v619
    %v624 = vand.u32 2147483647, %v614
    %vm625 = vcmp.eq.f32.partialorder %v624, 8.507059e+37
    %v626 = vand.u32 %v614, 2147483648
    %v627 = vor.u32 1.1754944e-38, %v626
    %v628 = vsel %vm625, %v627, %v623
    %v629 = vmul.f32 1.0, %v628
    %v631 = vrot.slane %v570, 1
    %v633 = vadd.f32 %v631, %v594
    %v634 = vxor.u32 %v633, 2147483648
    %v635 = vmul.f32 %v634, 1.442695
    %v636 = vpow.pop %v635
    %v637 = vadd.f32 %v636, 1.0
    %v638 = vrcp.pop %v637
    %v639 = vmul.f32 %v637, %v638
    %v640 = vsub.f32 1.0, %v639
    %v641 = vmul.f32 %v638, %v640
    %v642 = vadd.f32 %v638, %v641
    %vm643 = vweird.f32 %v637
    %vm644 = vweird.f32 %v638
    %vm645 = vmor %vm643, %vm644
    %v646 = vsel %vm645, %v638, %v642
    %v647 = vand.u32 2147483647, %v637
    %vm648 = vcmp.eq.f32.partialorder %v647, 8.507059e+37
    %v649 = vand.u32 %v637, 2147483648
    %v650 = vor.u32 1.1754944e-38, %v649
    %v651 = vsel %vm648, %v650, %v646
    %v652 = vmul.f32 1.0, %v651
    %v653 = vmul.f32 %v629, %v607
    %v654 = vrot.slane %v570, 2
    %v656 = vadd.f32 %v654, %v653
    %v657 = vtanh.pop %v656
    %v658 = vsub.f32 1.0, %v652
    %v659 = vmul.f32 %v658, %v657
    %v660 = vmul.f32 %v652, %v561
    %v661 = vadd.f32 %v659, %v660
    %v662 = vpack.c.bf16 %v661, %v661
    %v664 = vshll.u32 %v662, 16
    %vm667 = vsmask.f32 7938
    %vm668 = vmand %vm563, %vm667
    %v669 = vld [vmem:[#allocation12] sm:$0x1]
    %v670 = vsel %vm668, %v664, %v669
    %671 = vst [vmem:[#allocation12] sm:$0x1] %v670
    %s672 = scalar_lea.vmem [#allocation3], 2
    %v673 = vld [vmem:[%s672] ss:$8 sm:$0x7]
    %674 = vmatpush.bf16.msra.mxu0 %v437
    %675 = vmatpush.bf16.msra.mxu0 %v434
    %676 = vmatpush.bf16.msra.mxu0 %v431
    %677 = vmatpush.bf16.msra.mxu0 %v428
    %678 = vmatpush.bf16.msra.mxu0 %v425
    %679 = vmatpush.bf16.msra.mxu0 %v422
    %680 = vmatpush.bf16.msra.mxu0 %v419
    %681 = vmatpush.bf16.msra.mxu0 %v416
    %682 = vmatmul.bf16.gmra.mxu0 %v662
    %v683 = vpop.f32.mrf.mxu0
    %v684 = vadd.f32 %v465, %v683
    %v685 = vpop.f32.mrf.mxu0
    %686 = vdwg.mxu0
    %687 = vmatpush.bf16.msra.mxu0 %v438
    %688 = vmatpush.bf16.msra.mxu0 %v435
    %689 = vmatpush.bf16.msra.mxu0 %v432
    %690 = vmatpush.bf16.msra.mxu0 %v429
    %691 = vmatpush.bf16.msra.mxu0 %v426
    %692 = vmatpush.bf16.msra.mxu0 %v423
    %693 = vmatpush.bf16.msra.mxu0 %v420
    %694 = vmatpush.bf16.msra.mxu0 %v417
    %695 = vmatmul.bf16.gmra.mxu0 %v662
    %v696 = vpop.f32.mrf.mxu0
    %v697 = vadd.f32 %v466, %v696
    %v698 = vpop.f32.mrf.mxu0
    %699 = vdwg.mxu0
    %700 = vmatpush.bf16.msra.mxu0 %v439
    %701 = vmatpush.bf16.msra.mxu0 %v436
    %702 = vmatpush.bf16.msra.mxu0 %v433
    %703 = vmatpush.bf16.msra.mxu0 %v430
    %704 = vmatpush.bf16.msra.mxu0 %v427
    %705 = vmatpush.bf16.msra.mxu0 %v424
    %706 = vmatpush.bf16.msra.mxu0 %v421
    %707 = vmatpush.bf16.msra.mxu0 %v418
    %708 = vmatmul.bf16.gmra.mxu0 %v662
    %v709 = vpop.f32.mrf.mxu0
    %v710 = vadd.f32 %v467, %v709
    %v711 = vpop.f32.mrf.mxu0
    %712 = vdwg.mxu0
    %v713 = vadd.f32 %v673, %v684
    %v714 = vxor.u32 %v713, 2147483648
    %v715 = vmul.f32 %v714, 1.442695
    %v716 = vpow.pop %v715
    %v717 = vadd.f32 %v716, 1.0
    %v718 = vrcp.pop %v717
    %v719 = vmul.f32 %v717, %v718
    %v720 = vsub.f32 1.0, %v719
    %v721 = vmul.f32 %v718, %v720
    %v722 = vadd.f32 %v718, %v721
    %vm723 = vweird.f32 %v717
    %vm724 = vweird.f32 %v718
    %vm725 = vmor %vm723, %vm724
    %v726 = vsel %vm725, %v718, %v722
    %v727 = vand.u32 2147483647, %v717
    %vm728 = vcmp.eq.f32.partialorder %v727, 8.507059e+37
    %v729 = vand.u32 %v717, 2147483648
    %v730 = vor.u32 1.1754944e-38, %v729
    %v731 = vsel %vm728, %v730, %v726
    %v732 = vmul.f32 1.0, %v731
    %v734 = vrot.slane %v673, 1
    %v736 = vadd.f32 %v734, %v697
    %v737 = vxor.u32 %v736, 2147483648
    %v738 = vmul.f32 %v737, 1.442695
    %v739 = vpow.pop %v738
    %v740 = vadd.f32 %v739, 1.0
    %v741 = vrcp.pop %v740
    %v742 = vmul.f32 %v740, %v741
    %v743 = vsub.f32 1.0, %v742
    %v744 = vmul.f32 %v741, %v743
    %v745 = vadd.f32 %v741, %v744
    %vm746 = vweird.f32 %v740
    %vm747 = vweird.f32 %v741
    %vm748 = vmor %vm746, %vm747
    %v749 = vsel %vm748, %v741, %v745
    %v750 = vand.u32 2147483647, %v740
    %vm751 = vcmp.eq.f32.partialorder %v750, 8.507059e+37
    %v752 = vand.u32 %v740, 2147483648
    %v753 = vor.u32 1.1754944e-38, %v752
    %v754 = vsel %vm751, %v753, %v749
    %v755 = vmul.f32 1.0, %v754
    %v756 = vmul.f32 %v732, %v710
    %v757 = vrot.slane %v673, 2
    %v759 = vadd.f32 %v757, %v756
    %v760 = vtanh.pop %v759
    %v761 = vsub.f32 1.0, %v755
    %v762 = vmul.f32 %v761, %v760
    %v763 = vmul.f32 %v755, %v661
    %v764 = vadd.f32 %v762, %v763
    %v765 = vpack.c.bf16 %v764, %v764
    %v767 = vrot.slane %v765, 7
    %vm769 = vcmask 1041409
    %vm770 = vsmask.f32 1280
    %vm771 = vmand %vm769, %vm770
    %v772 = vld [vmem:[#allocation12] sm:$0x2]
    %v773 = vsel %vm771, %v767, %v772
    %774 = vst [vmem:[#allocation12] sm:$0x2] %v773
    %s775 = scalar_lea.vmem [#allocation3], 3
    %v776 = vld [vmem:[%s775] ss:$8 sm:$0x7]
    %777 = vmatpush.bf16.msra.mxu0 %v437
    %778 = vmatpush.bf16.msra.mxu0 %v434
    %779 = vmatpush.bf16.msra.mxu0 %v431
    %780 = vmatpush.bf16.msra.mxu0 %v428
    %781 = vmatpush.bf16.msra.mxu0 %v425
    %782 = vmatpush.bf16.msra.mxu0 %v422
    %783 = vmatpush.bf16.msra.mxu0 %v419
    %784 = vmatpush.bf16.msra.mxu0 %v416
    %785 = vmatmul.bf16.gmra.mxu0 %v765
    %v786 = vpop.f32.mrf.mxu0
    %v787 = vadd.f32 %v465, %v786
    %v788 = vpop.f32.mrf.mxu0
    %789 = vdwg.mxu0
    %790 = vmatpush.bf16.msra.mxu0 %v438
    %791 = vmatpush.bf16.msra.mxu0 %v435
    %792 = vmatpush.bf16.msra.mxu0 %v432
    %793 = vmatpush.bf16.msra.mxu0 %v429
    %794 = vmatpush.bf16.msra.mxu0 %v426
    %795 = vmatpush.bf16.msra.mxu0 %v423
    %796 = vmatpush.bf16.msra.mxu0 %v420
    %797 = vmatpush.bf16.msra.mxu0 %v417
    %798 = vmatmul.bf16.gmra.mxu0 %v765
    %v799 = vpop.f32.mrf.mxu0
    %v800 = vadd.f32 %v466, %v799
    %v801 = vpop.f32.mrf.mxu0
    %802 = vdwg.mxu0
    %803 = vmatpush.bf16.msra.mxu0 %v439
    %804 = vmatpush.bf16.msra.mxu0 %v436
    %805 = vmatpush.bf16.msra.mxu0 %v433
    %806 = vmatpush.bf16.msra.mxu0 %v430
    %807 = vmatpush.bf16.msra.mxu0 %v427
    %808 = vmatpush.bf16.msra.mxu0 %v424
    %809 = vmatpush.bf16.msra.mxu0 %v421
    %810 = vmatpush.bf16.msra.mxu0 %v418
    %811 = vmatmul.bf16.gmra.mxu0 %v765
    %v812 = vpop.f32.mrf.mxu0
    %v813 = vadd.f32 %v467, %v812
    %v814 = vpop.f32.mrf.mxu0
    %815 = vdwg.mxu0
    %v816 = vadd.f32 %v776, %v787
    %v817 = vxor.u32 %v816, 2147483648
    %v818 = vmul.f32 %v817, 1.442695
    %v819 = vpow.pop %v818
    %v820 = vadd.f32 %v819, 1.0
    %v821 = vrcp.pop %v820
    %v822 = vmul.f32 %v820, %v821
    %v823 = vsub.f32 1.0, %v822
    %v824 = vmul.f32 %v821, %v823
    %v825 = vadd.f32 %v821, %v824
    %vm826 = vweird.f32 %v820
    %vm827 = vweird.f32 %v821
    %vm828 = vmor %vm826, %vm827
    %v829 = vsel %vm828, %v821, %v825
    %v830 = vand.u32 2147483647, %v820
    %vm831 = vcmp.eq.f32.partialorder %v830, 8.507059e+37
    %v832 = vand.u32 %v820, 2147483648
    %v833 = vor.u32 1.1754944e-38, %v832
    %v834 = vsel %vm831, %v833, %v829
    %v835 = vmul.f32 1.0, %v834
    %v837 = vrot.slane %v776, 1
    %v839 = vadd.f32 %v837, %v800
    %v840 = vxor.u32 %v839, 2147483648
    %v841 = vmul.f32 %v840, 1.442695
    %v842 = vpow.pop %v841
    %v843 = vadd.f32 %v842, 1.0
    %v844 = vrcp.pop %v843
    %v845 = vmul.f32 %v843, %v844
    %v846 = vsub.f32 1.0, %v845
    %v847 = vmul.f32 %v844, %v846
    %v848 = vadd.f32 %v844, %v847
    %vm849 = vweird.f32 %v843
    %vm850 = vweird.f32 %v844
    %vm851 = vmor %vm849, %vm850
    %v852 = vsel %vm851, %v844, %v848
    %v853 = vand.u32 2147483647, %v843
    %vm854 = vcmp.eq.f32.partialorder %v853, 8.507059e+37
    %v855 = vand.u32 %v843, 2147483648
    %v856 = vor.u32 1.1754944e-38, %v855
    %v857 = vsel %vm854, %v856, %v852
    %v858 = vmul.f32 1.0, %v857
    %v859 = vmul.f32 %v835, %v813
    %v860 = vrot.slane %v776, 2
    %v862 = vadd.f32 %v860, %v859
    %v863 = vtanh.pop %v862
    %v864 = vsub.f32 1.0, %v858
    %v865 = vmul.f32 %v864, %v863
    %v866 = vmul.f32 %v858, %v764
    %v867 = vadd.f32 %v865, %v866
    %v868 = vpack.c.bf16 %v867, %v867
    %v870 = vshll.u32 %v868, 16
    %v872 = vrot.slane %v870, 7
    %vm874 = vsmask.f32 7942
    %vm875 = vmand %vm769, %vm874
    %v876 = vld [vmem:[#allocation12] sm:$0x2]
    %v877 = vsel %vm875, %v872, %v876
    %878 = vst [vmem:[#allocation12] sm:$0x2] %v877
    %s879 = scalar_lea.vmem [#allocation3], 4
    %v880 = vld [vmem:[%s879] ss:$8 sm:$0x7]
    %881 = vmatpush.bf16.msra.mxu0 %v437
    %882 = vmatpush.bf16.msra.mxu0 %v434
    %883 = vmatpush.bf16.msra.mxu0 %v431
    %884 = vmatpush.bf16.msra.mxu0 %v428
    %885 = vmatpush.bf16.msra.mxu0 %v425
    %886 = vmatpush.bf16.msra.mxu0 %v422
    %887 = vmatpush.bf16.msra.mxu0 %v419
    %888 = vmatpush.bf16.msra.mxu0 %v416
    %889 = vmatmul.bf16.gmra.mxu0 %v868
    %v890 = vpop.f32.mrf.mxu0
    %v891 = vadd.f32 %v465, %v890
    %v892 = vpop.f32.mrf.mxu0
    %893 = vdwg.mxu0
    %894 = vmatpush.bf16.msra.mxu0 %v438
    %895 = vmatpush.bf16.msra.mxu0 %v435
    %896 = vmatpush.bf16.msra.mxu0 %v432
    %897 = vmatpush.bf16.msra.mxu0 %v429
    %898 = vmatpush.bf16.msra.mxu0 %v426
    %899 = vmatpush.bf16.msra.mxu0 %v423
    %900 = vmatpush.bf16.msra.mxu0 %v420
    %901 = vmatpush.bf16.msra.mxu0 %v417
    %902 = vmatmul.bf16.gmra.mxu0 %v868
    %v903 = vpop.f32.mrf.mxu0
    %v904 = vadd.f32 %v466, %v903
    %v905 = vpop.f32.mrf.mxu0
    %906 = vdwg.mxu0
    %907 = vmatpush.bf16.msra.mxu0 %v439
    %908 = vmatpush.bf16.msra.mxu0 %v436
    %909 = vmatpush.bf16.msra.mxu0 %v433
    %910 = vmatpush.bf16.msra.mxu0 %v430
    %911 = vmatpush.bf16.msra.mxu0 %v427
    %912 = vmatpush.bf16.msra.mxu0 %v424
    %913 = vmatpush.bf16.msra.mxu0 %v421
    %914 = vmatpush.bf16.msra.mxu0 %v418
    %915 = vmatmul.bf16.gmra.mxu0 %v868
    %v916 = vpop.f32.mrf.mxu0
    %v917 = vadd.f32 %v467, %v916
    %v918 = vpop.f32.mrf.mxu0
    %919 = vdwg.mxu0
    %v920 = vadd.f32 %v880, %v891
    %v921 = vxor.u32 %v920, 2147483648
    %v922 = vmul.f32 %v921, 1.442695
    %v923 = vpow.pop %v922
    %v924 = vadd.f32 %v923, 1.0
    %v925 = vrcp.pop %v924
    %v926 = vmul.f32 %v924, %v925
    %v927 = vsub.f32 1.0, %v926
    %v928 = vmul.f32 %v925, %v927
    %v929 = vadd.f32 %v925, %v928
    %vm930 = vweird.f32 %v924
    %vm931 = vweird.f32 %v925
    %vm932 = vmor %vm930, %vm931
    %v933 = vsel %vm932, %v925, %v929
    %v934 = vand.u32 2147483647, %v924
    %vm935 = vcmp.eq.f32.partialorder %v934, 8.507059e+37
    %v936 = vand.u32 %v924, 2147483648
    %v937 = vor.u32 1.1754944e-38, %v936
    %v938 = vsel %vm935, %v937, %v933
    %v939 = vmul.f32 1.0, %v938
    %v941 = vrot.slane %v880, 1
    %v943 = vadd.f32 %v941, %v904
    %v944 = vxor.u32 %v943, 2147483648
    %v945 = vmul.f32 %v944, 1.442695
    %v946 = vpow.pop %v945
    %v947 = vadd.f32 %v946, 1.0
    %v948 = vrcp.pop %v947
    %v949 = vmul.f32 %v947, %v948
    %v950 = vsub.f32 1.0, %v949
    %v951 = vmul.f32 %v948, %v950
    %v952 = vadd.f32 %v948, %v951
    %vm953 = vweird.f32 %v947
    %vm954 = vweird.f32 %v948
    %vm955 = vmor %vm953, %vm954
    %v956 = vsel %vm955, %v948, %v952
    %v957 = vand.u32 2147483647, %v947
    %vm958 = vcmp.eq.f32.partialorder %v957, 8.507059e+37
    %v959 = vand.u32 %v947, 2147483648
    %v960 = vor.u32 1.1754944e-38, %v959
    %v961 = vsel %vm958, %v960, %v956
    %v962 = vmul.f32 1.0, %v961
    %v963 = vmul.f32 %v939, %v917
    %v964 = vrot.slane %v880, 2
    %v966 = vadd.f32 %v964, %v963
    %v967 = vtanh.pop %v966
    %v968 = vsub.f32 1.0, %v962
    %v969 = vmul.f32 %v968, %v967
    %v970 = vmul.f32 %v962, %v867
    %v971 = vadd.f32 %v969, %v970
    %v972 = vpack.c.bf16 %v971, %v971
    %v974 = vrot.slane %v972, 6
    %vm976 = vcmask 1042434
    %vm977 = vsmask.f32 2304
    %vm978 = vmand %vm976, %vm977
    %v979 = vld [vmem:[#allocation12] sm:$0x4]
    %v980 = vsel %vm978, %v974, %v979
    %981 = vst [vmem:[#allocation12] sm:$0x4] %v980
    %s982 = scalar_lea.vmem [#allocation3], 5
    %v983 = vld [vmem:[%s982] ss:$8 sm:$0x7]
    %984 = vmatpush.bf16.msra.mxu0 %v437
    %985 = vmatpush.bf16.msra.mxu0 %v434
    %986 = vmatpush.bf16.msra.mxu0 %v431
    %987 = vmatpush.bf16.msra.mxu0 %v428
    %988 = vmatpush.bf16.msra.mxu0 %v425
    %989 = vmatpush.bf16.msra.mxu0 %v422
    %990 = vmatpush.bf16.msra.mxu0 %v419
    %991 = vmatpush.bf16.msra.mxu0 %v416
    %992 = vmatmul.bf16.gmra.mxu0 %v972
    %v993 = vpop.f32.mrf.mxu0
    %v994 = vadd.f32 %v465, %v993
    %v995 = vpop.f32.mrf.mxu0
    %996 = vdwg.mxu0
    %997 = vmatpush.bf16.msra.mxu0 %v438
    %998 = vmatpush.bf16.msra.mxu0 %v435
    %999 = vmatpush.bf16.msra.mxu0 %v432
    %1000 = vmatpush.bf16.msra.mxu0 %v429
    %1001 = vmatpush.bf16.msra.mxu0 %v426
    %1002 = vmatpush.bf16.msra.mxu0 %v423
    %1003 = vmatpush.bf16.msra.mxu0 %v420
    %1004 = vmatpush.bf16.msra.mxu0 %v417
    %1005 = vmatmul.bf16.gmra.mxu0 %v972
    %v1006 = vpop.f32.mrf.mxu0
    %v1007 = vadd.f32 %v466, %v1006
    %v1008 = vpop.f32.mrf.mxu0
    %1009 = vdwg.mxu0
    %1010 = vmatpush.bf16.msra.mxu0 %v439
    %1011 = vmatpush.bf16.msra.mxu0 %v436
    %1012 = vmatpush.bf16.msra.mxu0 %v433
    %1013 = vmatpush.bf16.msra.mxu0 %v430
    %1014 = vmatpush.bf16.msra.mxu0 %v427
    %1015 = vmatpush.bf16.msra.mxu0 %v424
    %1016 = vmatpush.bf16.msra.mxu0 %v421
    %1017 = vmatpush.bf16.msra.mxu0 %v418
    %1018 = vmatmul.bf16.gmra.mxu0 %v972
    %v1019 = vpop.f32.mrf.mxu0
    %v1020 = vadd.f32 %v467, %v1019
    %v1021 = vpop.f32.mrf.mxu0
    %1022 = vdwg.mxu0
    %v1023 = vadd.f32 %v983, %v994
    %v1024 = vxor.u32 %v1023, 2147483648
    %v1025 = vmul.f32 %v1024, 1.442695
    %v1026 = vpow.pop %v1025
    %v1027 = vadd.f32 %v1026, 1.0
    %v1028 = vrcp.pop %v1027
    %v1029 = vmul.f32 %v1027, %v1028
    %v1030 = vsub.f32 1.0, %v1029
    %v1031 = vmul.f32 %v1028, %v1030
    %v1032 = vadd.f32 %v1028, %v1031
    %vm1033 = vweird.f32 %v1027
    %vm1034 = vweird.f32 %v1028
    %vm1035 = vmor %vm1033, %vm1034
    %v1036 = vsel %vm1035, %v1028, %v1032
    %v1037 = vand.u32 2147483647, %v1027
    %vm1038 = vcmp.eq.f32.partialorder %v1037, 8.507059e+37
    %v1039 = vand.u32 %v1027, 2147483648
    %v1040 = vor.u32 1.1754944e-38, %v1039
    %v1041 = vsel %vm1038, %v1040, %v1036
    %v1042 = vmul.f32 1.0, %v1041
    %v1044 = vrot.slane %v983, 1
    %v1046 = vadd.f32 %v1044, %v1007
    %v1047 = vxor.u32 %v1046, 2147483648
    %v1048 = vmul.f32 %v1047, 1.442695
    %v1049 = vpow.pop %v1048
    %v1050 = vadd.f32 %v1049, 1.0
    %v1051 = vrcp.pop %v1050
    %v1052 = vmul.f32 %v1050, %v1051
    %v1053 = vsub.f32 1.0, %v1052
    %v1054 = vmul.f32 %v1051, %v1053
    %v1055 = vadd.f32 %v1051, %v1054
    %vm1056 = vweird.f32 %v1050
    %vm1057 = vweird.f32 %v1051
    %vm1058 = vmor %vm1056, %vm1057
    %v1059 = vsel %vm1058, %v1051, %v1055
    %v1060 = vand.u32 2147483647, %v1050
    %vm1061 = vcmp.eq.f32.partialorder %v1060, 8.507059e+37
    %v1062 = vand.u32 %v1050, 2147483648
    %v1063 = vor.u32 1.1754944e-38, %v1062
    %v1064 = vsel %vm1061, %v1063, %v1059
    %v1065 = vmul.f32 1.0, %v1064
    %v1066 = vmul.f32 %v1042, %v1020
    %v1067 = vrot.slane %v983, 2
    %v1069 = vadd.f32 %v1067, %v1066
    %v1070 = vtanh.pop %v1069
    %v1071 = vsub.f32 1.0, %v1065
    %v1072 = vmul.f32 %v1071, %v1070
    %v1073 = vmul.f32 %v1065, %v971
    %v1074 = vadd.f32 %v1072, %v1073
    %v1075 = vpack.c.bf16 %v1074, %v1074
    %v1077 = vshll.u32 %v1075, 16
    %v1079 = vrot.slane %v1077, 6
    %vm1081 = vsmask.f32 7946
    %vm1082 = vmand %vm976, %vm1081
    %v1083 = vld [vmem:[#allocation12] sm:$0x4]
    %v1084 = vsel %vm1082, %v1079, %v1083
    %1085 = vst [vmem:[#allocation12] sm:$0x4] %v1084
    %s1086 = scalar_lea.vmem [#allocation3], 6
    %v1087 = vld [vmem:[%s1086] ss:$8 sm:$0x7]
    %1088 = vmatpush.bf16.msra.mxu0 %v437
    %1089 = vmatpush.bf16.msra.mxu0 %v434
    %1090 = vmatpush.bf16.msra.mxu0 %v431
    %1091 = vmatpush.bf16.msra.mxu0 %v428
    %1092 = vmatpush.bf16.msra.mxu0 %v425
    %1093 = vmatpush.bf16.msra.mxu0 %v422
    %1094 = vmatpush.bf16.msra.mxu0 %v419
    %1095 = vmatpush.bf16.msra.mxu0 %v416
    %1096 = vmatmul.bf16.gmra.mxu0 %v1075
    %v1097 = vpop.f32.mrf.mxu0
    %v1098 = vadd.f32 %v465, %v1097
    %v1099 = vpop.f32.mrf.mxu0
    %1100 = vdwg.mxu0
    %1101 = vmatpush.bf16.msra.mxu0 %v438
    %1102 = vmatpush.bf16.msra.mxu0 %v435
    %1103 = vmatpush.bf16.msra.mxu0 %v432
    %1104 = vmatpush.bf16.msra.mxu0 %v429
    %1105 = vmatpush.bf16.msra.mxu0 %v426
    %1106 = vmatpush.bf16.msra.mxu0 %v423
    %1107 = vmatpush.bf16.msra.mxu0 %v420
    %1108 = vmatpush.bf16.msra.mxu0 %v417
    %1109 = vmatmul.bf16.gmra.mxu0 %v1075
    %v1110 = vpop.f32.mrf.mxu0
    %v1111 = vadd.f32 %v466, %v1110
    %v1112 = vpop.f32.mrf.mxu0
    %1113 = vdwg.mxu0
    %1114 = vmatpush.bf16.msra.mxu0 %v439
    %1115 = vmatpush.bf16.msra.mxu0 %v436
    %1116 = vmatpush.bf16.msra.mxu0 %v433
    %1117 = vmatpush.bf16.msra.mxu0 %v430
    %1118 = vmatpush.bf16.msra.mxu0 %v427
    %1119 = vmatpush.bf16.msra.mxu0 %v424
    %1120 = vmatpush.bf16.msra.mxu0 %v421
    %1121 = vmatpush.bf16.msra.mxu0 %v418
    %1122 = vmatmul.bf16.gmra.mxu0 %v1075
    %v1123 = vpop.f32.mrf.mxu0
    %v1124 = vadd.f32 %v467, %v1123
    %v1125 = vpop.f32.mrf.mxu0
    %1126 = vdwg.mxu0
    %v1127 = vadd.f32 %v1087, %v1098
    %v1128 = vxor.u32 %v1127, 2147483648
    %v1129 = vmul.f32 %v1128, 1.442695
    %v1130 = vpow.pop %v1129
    %v1131 = vadd.f32 %v1130, 1.0
    %v1132 = vrcp.pop %v1131
    %v1133 = vmul.f32 %v1131, %v1132
    %v1134 = vsub.f32 1.0, %v1133
    %v1135 = vmul.f32 %v1132, %v1134
    %v1136 = vadd.f32 %v1132, %v1135
    %vm1137 = vweird.f32 %v1131
    %vm1138 = vweird.f32 %v1132
    %vm1139 = vmor %vm1137, %vm1138
    %v1140 = vsel %vm1139, %v1132, %v1136
    %v1141 = vand.u32 2147483647, %v1131
    %vm1142 = vcmp.eq.f32.partialorder %v1141, 8.507059e+37
    %v1143 = vand.u32 %v1131, 2147483648
    %v1144 = vor.u32 1.1754944e-38, %v1143
    %v1145 = vsel %vm1142, %v1144, %v1140
    %v1146 = vmul.f32 1.0, %v1145
    %v1148 = vrot.slane %v1087, 1
    %v1150 = vadd.f32 %v1148, %v1111
    %v1151 = vxor.u32 %v1150, 2147483648
    %v1152 = vmul.f32 %v1151, 1.442695
    %v1153 = vpow.pop %v1152
    %v1154 = vadd.f32 %v1153, 1.0
    %v1155 = vrcp.pop %v1154
    %v1156 = vmul.f32 %v1154, %v1155
    %v1157 = vsub.f32 1.0, %v1156
    %v1158 = vmul.f32 %v1155, %v1157
    %v1159 = vadd.f32 %v1155, %v1158
    %vm1160 = vweird.f32 %v1154
    %vm1161 = vweird.f32 %v1155
    %vm1162 = vmor %vm1160, %vm1161
    %v1163 = vsel %vm1162, %v1155, %v1159
    %v1164 = vand.u32 2147483647, %v1154
    %vm1165 = vcmp.eq.f32.partialorder %v1164, 8.507059e+37
    %v1166 = vand.u32 %v1154, 2147483648
    %v1167 = vor.u32 1.1754944e-38, %v1166
    %v1168 = vsel %vm1165, %v1167, %v1163
    %v1169 = vmul.f32 1.0, %v1168
    %v1170 = vmul.f32 %v1146, %v1124
    %v1171 = vrot.slane %v1087, 2
    %v1173 = vadd.f32 %v1171, %v1170
    %v1174 = vtanh.pop %v1173
    %v1175 = vsub.f32 1.0, %v1169
    %v1176 = vmul.f32 %v1175, %v1174
    %v1177 = vmul.f32 %v1169, %v1074
    %v1178 = vadd.f32 %v1176, %v1177
    %v1179 = vpack.c.bf16 %v1178, %v1178
    %v1181 = vrot.slane %v1179, 5
    %vm1183 = vcmask 1043459
    %vm1184 = vsmask.f32 3328
    %vm1185 = vmand %vm1183, %vm1184
    %v1186 = vld [vmem:[#allocation12] sm:$0x8]
    %v1187 = vsel %vm1185, %v1181, %v1186
    %1188 = vst [vmem:[#allocation12] sm:$0x8] %v1187
    %s1189 = scalar_lea.vmem [#allocation3], 7
    %v1190 = vld [vmem:[%s1189] ss:$8 sm:$0x7]
    %1191 = vmatpush.bf16.msra.mxu0 %v437
    %1192 = vmatpush.bf16.msra.mxu0 %v434
    %1193 = vmatpush.bf16.msra.mxu0 %v431
    %1194 = vmatpush.bf16.msra.mxu0 %v428
    %1195 = vmatpush.bf16.msra.mxu0 %v425
    %1196 = vmatpush.bf16.msra.mxu0 %v422
    %1197 = vmatpush.bf16.msra.mxu0 %v419
    %1198 = vmatpush.bf16.msra.mxu0 %v416
    %1199 = vmatmul.bf16.gmra.mxu0 %v1179
    %v1200 = vpop.f32.mrf.mxu0
    %v1201 = vadd.f32 %v465, %v1200
    %v1202 = vpop.f32.mrf.mxu0
    %1203 = vdwg.mxu0
    %1204 = vmatpush.bf16.msra.mxu0 %v438
    %1205 = vmatpush.bf16.msra.mxu0 %v435
    %1206 = vmatpush.bf16.msra.mxu0 %v432
    %1207 = vmatpush.bf16.msra.mxu0 %v429
    %1208 = vmatpush.bf16.msra.mxu0 %v426
    %1209 = vmatpush.bf16.msra.mxu0 %v423
    %1210 = vmatpush.bf16.msra.mxu0 %v420
    %1211 = vmatpush.bf16.msra.mxu0 %v417
    %1212 = vmatmul.bf16.gmra.mxu0 %v1179
    %v1213 = vpop.f32.mrf.mxu0
    %v1214 = vadd.f32 %v466, %v1213
    %v1215 = vpop.f32.mrf.mxu0
    %1216 = vdwg.mxu0
    %1217 = vmatpush.bf16.msra.mxu0 %v439
    %1218 = vmatpush.bf16.msra.mxu0 %v436
    %1219 = vmatpush.bf16.msra.mxu0 %v433
    %1220 = vmatpush.bf16.msra.mxu0 %v430
    %1221 = vmatpush.bf16.msra.mxu0 %v427
    %1222 = vmatpush.bf16.msra.mxu0 %v424
    %1223 = vmatpush.bf16.msra.mxu0 %v421
    %1224 = vmatpush.bf16.msra.mxu0 %v418
    %1225 = vmatmul.bf16.gmra.mxu0 %v1179
    %v1226 = vpop.f32.mrf.mxu0
    %v1227 = vadd.f32 %v467, %v1226
    %v1228 = vpop.f32.mrf.mxu0
    %1229 = vdwg.mxu0
    %v1230 = vadd.f32 %v1190, %v1201
    %v1231 = vxor.u32 %v1230, 2147483648
    %v1232 = vmul.f32 %v1231, 1.442695
    %v1233 = vpow.pop %v1232
    %v1234 = vadd.f32 %v1233, 1.0
    %v1235 = vrcp.pop %v1234
    %v1236 = vmul.f32 %v1234, %v1235
    %v1237 = vsub.f32 1.0, %v1236
    %v1238 = vmul.f32 %v1235, %v1237
    %v1239 = vadd.f32 %v1235, %v1238
    %vm1240 = vweird.f32 %v1234
    %vm1241 = vweird.f32 %v1235
    %vm1242 = vmor %vm1240, %vm1241
    %v1243 = vsel %vm1242, %v1235, %v1239
    %v1244 = vand.u32 2147483647, %v1234
    %vm1245 = vcmp.eq.f32.partialorder %v1244, 8.507059e+37
    %v1246 = vand.u32 %v1234, 2147483648
    %v1247 = vor.u32 1.1754944e-38, %v1246
    %v1248 = vsel %vm1245, %v1247, %v1243
    %v1249 = vmul.f32 1.0, %v1248
    %v1251 = vrot.slane %v1190, 1
    %v1253 = vadd.f32 %v1251, %v1214
    %v1254 = vxor.u32 %v1253, 2147483648
    %v1255 = vmul.f32 %v1254, 1.442695
    %v1256 = vpow.pop %v1255
    %v1257 = vadd.f32 %v1256, 1.0
    %v1258 = vrcp.pop %v1257
    %v1259 = vmul.f32 %v1257, %v1258
    %v1260 = vsub.f32 1.0, %v1259
    %v1261 = vmul.f32 %v1258, %v1260
    %v1262 = vadd.f32 %v1258, %v1261
    %vm1263 = vweird.f32 %v1257
    %vm1264 = vweird.f32 %v1258
    %vm1265 = vmor %vm1263, %vm1264
    %v1266 = vsel %vm1265, %v1258, %v1262
    %v1267 = vand.u32 2147483647, %v1257
    %vm1268 = vcmp.eq.f32.partialorder %v1267, 8.507059e+37
    %v1269 = vand.u32 %v1257, 2147483648
    %v1270 = vor.u32 1.1754944e-38, %v1269
    %v1271 = vsel %vm1268, %v1270, %v1266
    %v1272 = vmul.f32 1.0, %v1271
    %v1273 = vmul.f32 %v1249, %v1227
    %v1274 = vrot.slane %v1190, 2
    %v1276 = vadd.f32 %v1274, %v1273
    %v1277 = vtanh.pop %v1276
    %v1278 = vsub.f32 1.0, %v1272
    %v1279 = vmul.f32 %v1278, %v1277
    %v1280 = vmul.f32 %v1272, %v1178
    %v1281 = vadd.f32 %v1279, %v1280
    %v1282 = vpack.c.bf16 %v1281, %v1281
    %v1284 = vshll.u32 %v1282, 16
    %v1286 = vrot.slane %v1284, 5
    %vm1288 = vsmask.f32 7950
    %vm1289 = vmand %vm1183, %vm1288
    %v1290 = vld [vmem:[#allocation12] sm:$0x8]
    %v1291 = vsel %vm1289, %v1286, %v1290
    %1292 = vst [vmem:[#allocation12] sm:$0x8] %v1291
    %1293 = vst [vmem:[#allocation2] sm:$0x1] %v1281
    // Predicated region
    $region46: #{tpu_custom_call.1} parent=1 // pred_check
      _
    $region47: #{tpu_custom_call.1} parent=1 // pred_check_branch
      %1295 = sbr.rel (0) target = $region49
    $region48: #{tpu_custom_call.1} parent=1 // pred_region
      %1297 = vsyncadd [#allocation6], 0
      %s1299 = sshll.u32 [#allocation12], 4
      %s1300 = int_to_ptr.vmem [resolvable:$true] %s1299
      %s1301 = sshll.u32 %s6, 4
      %s1302 = int_to_ptr.hbm [resolvable:$true] %s1301
      %1304 = dma.vmem_to_hbm [thread:$0]  %s1300, 64, %s1302, [#allocation6]
    $region49: #{tpu_custom_call.1} parent=1 // pred_fallthru
      _
    // Predicated region
    $region50: #{tpu_custom_call.1} parent=1 // pred_check
      _
    $region51: #{tpu_custom_call.1} parent=1 // pred_check_branch
      %1306 = sbr.rel (0) target = $region53
    $region52: #{tpu_custom_call.1} parent=1 // pred_region
      %1308 = dma.done [#allocation6], 64
    $region53: #{tpu_custom_call.1} parent=1 // pred_fallthru
      _
    %1309 = vsyncpa [#allocation5], 1
    %1310 = vsyncpa [#allocation8], 1
    %1311 = vsyncpa [#allocation11], 1
    %1312 = vsyncpa [#allocation6], 1

</llo_original>
